<compile_context>
chip_gen: v7x
topology: tpu7x:2x2x1
jax: 0.10.0
libtpu: 0.0.40
codegen_flags: <defaults>
</compile_context>

<pallas_src>
import functools

import jax
import jax.numpy as jnp
from jax.experimental import pallas as pl
from jax.experimental.pallas import tpu as pltpu

_LANE = 128   # lane width: target for the output writeback padding
_BC = 8       # batch chunk = f32 sublane multiple; unit of the parallel grid axis


def _eeg_encoder_kernel(
    x_ref,       # (T*BC, H)     this chunk's inputs, time-major within chunk
    wih_ref,     # (H, 4H)       LSTM W_ih^T
    whh_ref,     # (H, 4H)       LSTM W_hh^T
    bl_ref,      # (1, 4H)       b_ih + b_hh
    ew_ref,      # (H, H)        encoder Linear W^T
    eb_ref,      # (1, H)
    w12_ref,     # (H, OUT_PAD)  fused fc1·fc2 weight (lane-padded)
    b12_ref,     # (1, OUT_PAD)  fused fc1·fc2 bias   (lane-padded)
    o_ref,       # (T*BC, OUT_PAD)
    h_all_ref,   # VMEM scratch (T*BC, H): stacked hidden states
    *,
    T, BC, H,
):
    # ---- hoisted input projection: one (T*BC, H) @ (H, 4H) matmul ----------
    xg_all = (
        jnp.dot(x_ref[...], wih_ref[...], preferred_element_type=jnp.float32)
        + bl_ref[...]
    )                                                    # (T*BC, 4H)
    whh = whh_ref[...]                                   # hoisted weight load

    # ---- serial LSTM recurrence; h/c live in vregs --------------------------
    # T is small & static -> fully unrolled at trace time.
    # TODO(synk): for long EEG sequences switch to lax.fori_loop with pl.ds
    # stores and stream x / the gate slab in T-chunks (VMEM bound on v7x).
    h = jnp.zeros((BC, H), jnp.float32)
    c = jnp.zeros((BC, H), jnp.float32)
    for t in range(T):
        gates = xg_all[t * BC:(t + 1) * BC, :] + jnp.dot(
            h, whh, preferred_element_type=jnp.float32)  # (BC, 4H)
        # PyTorch gate order i, f, g, o; sigmoid only on i/f/o, tanh on g.
        sig_if = jax.nn.sigmoid(gates[:, :2 * H])
        i_g = sig_if[:, :H]
        f_g = sig_if[:, H:]
        g_g = jnp.tanh(gates[:, 2 * H:3 * H])
        o_g = jax.nn.sigmoid(gates[:, 3 * H:])
        c = f_g * c + i_g * g_g
        h = o_g * jnp.tanh(c)
        # aligned, unmasked sublane store (BC == 8); bounds vreg live ranges
        h_all_ref[t * BC:(t + 1) * BC, :] = h

    # ---- post-LSTM MLP over the whole chunk at once --------------------------
    h_all = h_all_ref[...]                               # (T*BC, H)
    e = jnp.dot(h_all, ew_ref[...], preferred_element_type=jnp.float32) + eb_ref[...]
    e = jnp.maximum(e, 0.0)                              # ReLU
    z = jnp.dot(e, w12_ref[...], preferred_element_type=jnp.float32) + b12_ref[...]
    o_ref[...] = jax.nn.sigmoid(z)                       # lane-dense writeback


def eeg_encoder_forward(x, params):
    """x: (T, B, H) float32 -> (T, B, 10) float32."""
    T, B, H = x.shape
    (wih_t, whh_t, b_lstm, enc_w_t, enc_b, w1_t, b1, w2_t, b2) = params
    out_dim = w2_t.shape[-1]

    # ---- exact algebra: fold fc1 and fc2 into one linear ---------------------
    w12 = w1_t @ w2_t                       # (H, out_dim)
    b12 = b1 @ w2_t + b2                    # (1, out_dim)

    # ---- lane-pad the fused output projection to a 128 multiple --------------
    out_pad = -(-out_dim // _LANE) * _LANE
    w12p = jnp.zeros((H, out_pad), jnp.float32).at[:, :out_dim].set(w12)
    b12p = jnp.zeros((1, out_pad), jnp.float32).at[:, :out_dim].set(b12)

    # ---- pad batch to a sublane multiple; split into parallel 8-row chunks ----
    b_pad = -(-B // _BC) * _BC
    n_chunks = b_pad // _BC
    x_p = jnp.pad(x, ((0, 0), (0, b_pad - B), (0, 0)))
    # (T, B_pad, H) -> (n_chunks, T*BC, H), time-major inside each chunk
    x_c = (x_p.reshape(T, n_chunks, _BC, H)
           .transpose(1, 0, 2, 3)
           .reshape(n_chunks, T * _BC, H))

    def w_spec(shape):
        return pl.BlockSpec(shape, lambda j, s=shape: (0,) * len(s))

    out = pl.pallas_call(
        functools.partial(_eeg_encoder_kernel, T=T, BC=_BC, H=H),
        out_shape=jax.ShapeDtypeStruct((n_chunks, T * _BC, out_pad), jnp.float32),
        grid_spec=pltpu.PrefetchScalarGridSpec(
            num_scalar_prefetch=0,
            grid=(n_chunks,),
            in_specs=[
                pl.BlockSpec((None, T * _BC, H), lambda j: (j, 0, 0)),  # x chunk
                w_spec((H, 4 * H)),      # W_ih^T
                w_spec((H, 4 * H)),      # W_hh^T
                w_spec((1, 4 * H)),      # LSTM bias
                w_spec((H, H)),          # encoder Linear W^T
                w_spec((1, H)),          # encoder Linear b
                w_spec((H, out_pad)),    # fused fc1·fc2 W
                w_spec((1, out_pad)),    # fused fc1·fc2 b
            ],
            out_specs=pl.BlockSpec((None, T * _BC, out_pad), lambda j: (j, 0, 0)),
            scratch_shapes=[pltpu.VMEM((T * _BC, H), jnp.float32)],
        ),
        compiler_params=pltpu.CompilerParams(
            dimension_semantics=("parallel",),   # shards batch chunks over TCs (v7x)
        ),
    )(x_c, wih_t, whh_t, b_lstm, enc_w_t, enc_b, w12p, b12p)

    # undo chunking / padding
    out = (out.reshape(n_chunks, T, _BC, out_pad)
           .transpose(1, 0, 2, 3)
           .reshape(T, b_pad, out_pad))
    return out[:, :B, :out_dim]


def init_params(key, n_inputs, out_dim=10):
    """Deterministic synthetic parameters mirroring the PyTorch module shapes."""
    H = n_inputs
    ks = jax.random.split(key, 10)
    s = 0.1
    w_ih = s * jax.random.normal(ks[0], (4 * H, H), jnp.float32)   # LSTM weight_ih_l0
    w_hh = s * jax.random.normal(ks[1], (4 * H, H), jnp.float32)   # LSTM weight_hh_l0
    b_ih = s * jax.random.normal(ks[2], (4 * H,), jnp.float32)
    b_hh = s * jax.random.normal(ks[3], (4 * H,), jnp.float32)
    enc_w = s * jax.random.normal(ks[4], (H, H), jnp.float32)      # encoder Linear
    enc_b = s * jax.random.normal(ks[5], (H,), jnp.float32)
    w1 = s * jax.random.normal(ks[6], (H, H), jnp.float32)         # fc1
    b1 = s * jax.random.normal(ks[7], (H,), jnp.float32)
    w2 = s * jax.random.normal(ks[8], (out_dim, H), jnp.float32)   # fc2
    b2 = s * jax.random.normal(ks[9], (out_dim,), jnp.float32)

    # Pre-transpose for (rows, H) @ (H, ·) matmuls inside the kernel; biases (1, ·).
    return (
        w_ih.T,                               # (H, 4H)
        w_hh.T,                               # (H, 4H)
        (b_ih + b_hh).reshape(1, 4 * H),      # (1, 4H)
        enc_w.T,                              # (H, H)
        enc_b.reshape(1, H),
        w1.T,                                 # (H, H)
        b1.reshape(1, H),
        w2.T,                                 # (H, 10)
        b2.reshape(1, out_dim),
    )


if __name__ == "__main__":
    T, B, H = 8, 2, 32   # seq_len=8, batch=2, n_inputs=32
    key = jax.random.PRNGKey(0)
    kx, kp = jax.random.split(key)
    x = jax.random.normal(kx, (T, B, H), jnp.float32)
    params = init_params(kp, H)

    out = eeg_encoder_forward(x, params)
    jax.block_until_ready(out)
    assert out.shape == (T, B, 10)
    print("KERNEL_OK")
</pallas_src>

<mosaic_0001>
module attributes {stable_mosaic.version = 11 : i64} {
  func.func @_eeg_encoder_kernel(%arg0: i32, %arg1: memref<1x64x32xf32, #tpu.memory_space<vmem>>, %arg2: memref<32x128xf32, #tpu.memory_space<vmem>>, %arg3: memref<32x128xf32, #tpu.memory_space<vmem>>, %arg4: memref<1x128xf32, #tpu.memory_space<vmem>>, %arg5: memref<32x32xf32, #tpu.memory_space<vmem>>, %arg6: memref<1x32xf32, #tpu.memory_space<vmem>>, %arg7: memref<32x128xf32, #tpu.memory_space<vmem>>, %arg8: memref<1x128xf32, #tpu.memory_space<vmem>>, %arg9: memref<1x64x128xf32, #tpu.memory_space<vmem>>, %arg10: memref<64x32xf32, #tpu.memory_space<vmem>>) attributes {dimension_semantics = [#tpu.dimension_semantics<parallel>], iteration_bounds = array<i64: 1>, scalar_prefetch = 0 : i64, scratch_operands = 1 : i64, tpu.core_type = #tpu.core_type<tc>, window_params = [{transform_indices = @transform_0, window_bounds = array<i64: 1, 64, 32>}, {pipeline_mode = #tpu.pipeline_mode<synchronous>, transform_indices = @transform_1, window_bounds = array<i64: 32, 128>}, {pipeline_mode = #tpu.pipeline_mode<synchronous>, transform_indices = @transform_2, window_bounds = array<i64: 32, 128>}, {pipeline_mode = #tpu.pipeline_mode<synchronous>, transform_indices = @transform_3, window_bounds = array<i64: 1, 128>}, {pipeline_mode = #tpu.pipeline_mode<synchronous>, transform_indices = @transform_4, window_bounds = array<i64: 32, 32>}, {pipeline_mode = #tpu.pipeline_mode<synchronous>, transform_indices = @transform_5, window_bounds = array<i64: 1, 32>}, {pipeline_mode = #tpu.pipeline_mode<synchronous>, transform_indices = @transform_6, window_bounds = array<i64: 32, 128>}, {pipeline_mode = #tpu.pipeline_mode<synchronous>, transform_indices = @transform_7, window_bounds = array<i64: 1, 128>}, {transform_indices = @transform_8, window_bounds = array<i64: 1, 64, 128>}]} {
    %c0 = arith.constant 0 : index
    %c0_0 = arith.constant 0 : index
    %c0_1 = arith.constant 0 : index
    %0 = vector.load %arg1[%c0, %c0_0, %c0_1] : memref<1x64x32xf32, #tpu.memory_space<vmem>>, vector<1x64x32xf32>
    %1 = vector.shape_cast %0 : vector<1x64x32xf32> to vector<64x32xf32>
    %c0_2 = arith.constant 0 : index
    %c0_3 = arith.constant 0 : index
    %2 = vector.load %arg2[%c0_2, %c0_3] : memref<32x128xf32, #tpu.memory_space<vmem>>, vector<32x128xf32>
    %cst = arith.constant dense<0.000000e+00> : vector<64x128xf32>
    %3 = tpu.matmul %1, %2, %cst {dimension_numbers = #tpu.dot_dimension_numbers<[1], [0], [0], [1], [0, 0, 1, 1], [], []>} : vector<64x32xf32>, vector<32x128xf32>, vector<64x128xf32> -> vector<64x128xf32>
    %c0_4 = arith.constant 0 : index
    %c0_5 = arith.constant 0 : index
    %4 = vector.load %arg4[%c0_4, %c0_5] : memref<1x128xf32, #tpu.memory_space<vmem>>, vector<1x128xf32>
    %5 = vector.broadcast %4 : vector<1x128xf32> to vector<64x128xf32>
    %6 = arith.addf %3, %5 : vector<64x128xf32>
    %c0_6 = arith.constant 0 : index
    %c0_7 = arith.constant 0 : index
    %7 = vector.load %arg3[%c0_6, %c0_7] : memref<32x128xf32, #tpu.memory_space<vmem>>, vector<32x128xf32>
    %cst_8 = arith.constant 0.000000e+00 : f32
    %8 = vector.broadcast %cst_8 : f32 to vector<8x32xf32>
    %cst_9 = arith.constant 0.000000e+00 : f32
    %9 = vector.broadcast %cst_9 : f32 to vector<8x32xf32>
    %10 = vector.extract_strided_slice %6 {offsets = [0, 0], sizes = [8, 128], strides = [1, 1]} : vector<64x128xf32> to vector<8x128xf32>
    %cst_10 = arith.constant dense<0.000000e+00> : vector<8x128xf32>
    %11 = tpu.matmul %8, %7, %cst_10 {dimension_numbers = #tpu.dot_dimension_numbers<[1], [0], [0], [1], [0, 0, 1, 1], [], []>} : vector<8x32xf32>, vector<32x128xf32>, vector<8x128xf32> -> vector<8x128xf32>
    %12 = arith.addf %10, %11 : vector<8x128xf32>
    %13 = vector.extract_strided_slice %12 {offsets = [0, 0], sizes = [8, 64], strides = [1, 1]} : vector<8x128xf32> to vector<8x64xf32>
    %14 = arith.negf %13 : vector<8x64xf32>
    %15 = math.exp %14 : vector<8x64xf32>
    %cst_11 = arith.constant 1.000000e+00 : f32
    %16 = vector.broadcast %cst_11 : f32 to vector<8x64xf32>
    %17 = arith.addf %16, %15 : vector<8x64xf32>
    %18 = arith.divf %16, %17 : vector<8x64xf32>
    %19 = vector.extract_strided_slice %18 {offsets = [0, 0], sizes = [8, 32], strides = [1, 1]} : vector<8x64xf32> to vector<8x32xf32>
    %20 = vector.extract_strided_slice %18 {offsets = [0, 32], sizes = [8, 32], strides = [1, 1]} : vector<8x64xf32> to vector<8x32xf32>
    %21 = vector.extract_strided_slice %12 {offsets = [0, 64], sizes = [8, 32], strides = [1, 1]} : vector<8x128xf32> to vector<8x32xf32>
    %22 = math.tanh %21 : vector<8x32xf32>
    %23 = vector.extract_strided_slice %12 {offsets = [0, 96], sizes = [8, 32], strides = [1, 1]} : vector<8x128xf32> to vector<8x32xf32>
    %24 = arith.negf %23 : vector<8x32xf32>
    %25 = math.exp %24 : vector<8x32xf32>
    %cst_12 = arith.constant 1.000000e+00 : f32
    %26 = vector.broadcast %cst_12 : f32 to vector<8x32xf32>
    %27 = arith.addf %26, %25 : vector<8x32xf32>
    %28 = arith.divf %26, %27 : vector<8x32xf32>
    %29 = arith.mulf %20, %9 : vector<8x32xf32>
    %30 = arith.mulf %19, %22 : vector<8x32xf32>
    %31 = arith.addf %29, %30 : vector<8x32xf32>
    %32 = math.tanh %31 : vector<8x32xf32>
    %33 = arith.mulf %28, %32 : vector<8x32xf32>
    %c0_13 = arith.constant 0 : index
    %c0_14 = arith.constant 0 : index
    %34 = vector.load %arg10[%c0_13, %c0_14] : memref<64x32xf32, #tpu.memory_space<vmem>>, vector<8x32xf32>
    tpu.vector_store %arg10[%c0_13, %c0_14], %33 {strides = array<i32>} : memref<64x32xf32, #tpu.memory_space<vmem>>, vector<8x32xf32>,
    %35 = vector.extract_strided_slice %6 {offsets = [8, 0], sizes = [8, 128], strides = [1, 1]} : vector<64x128xf32> to vector<8x128xf32>
    %cst_15 = arith.constant dense<0.000000e+00> : vector<8x128xf32>
    %36 = tpu.matmul %33, %7, %cst_15 {dimension_numbers = #tpu.dot_dimension_numbers<[1], [0], [0], [1], [0, 0, 1, 1], [], []>} : vector<8x32xf32>, vector<32x128xf32>, vector<8x128xf32> -> vector<8x128xf32>
    %37 = arith.addf %35, %36 : vector<8x128xf32>
    %38 = vector.extract_strided_slice %37 {offsets = [0, 0], sizes = [8, 64], strides = [1, 1]} : vector<8x128xf32> to vector<8x64xf32>
    %39 = arith.negf %38 : vector<8x64xf32>
    %40 = math.exp %39 : vector<8x64xf32>
    %cst_16 = arith.constant 1.000000e+00 : f32
    %41 = vector.broadcast %cst_16 : f32 to vector<8x64xf32>
    %42 = arith.addf %41, %40 : vector<8x64xf32>
    %43 = arith.divf %41, %42 : vector<8x64xf32>
    %44 = vector.extract_strided_slice %43 {offsets = [0, 0], sizes = [8, 32], strides = [1, 1]} : vector<8x64xf32> to vector<8x32xf32>
    %45 = vector.extract_strided_slice %43 {offsets = [0, 32], sizes = [8, 32], strides = [1, 1]} : vector<8x64xf32> to vector<8x32xf32>
    %46 = vector.extract_strided_slice %37 {offsets = [0, 64], sizes = [8, 32], strides = [1, 1]} : vector<8x128xf32> to vector<8x32xf32>
    %47 = math.tanh %46 : vector<8x32xf32>
    %48 = vector.extract_strided_slice %37 {offsets = [0, 96], sizes = [8, 32], strides = [1, 1]} : vector<8x128xf32> to vector<8x32xf32>
    %49 = arith.negf %48 : vector<8x32xf32>
    %50 = math.exp %49 : vector<8x32xf32>
    %cst_17 = arith.constant 1.000000e+00 : f32
    %51 = vector.broadcast %cst_17 : f32 to vector<8x32xf32>
    %52 = arith.addf %51, %50 : vector<8x32xf32>
    %53 = arith.divf %51, %52 : vector<8x32xf32>
    %54 = arith.mulf %45, %31 : vector<8x32xf32>
    %55 = arith.mulf %44, %47 : vector<8x32xf32>
    %56 = arith.addf %54, %55 : vector<8x32xf32>
    %57 = math.tanh %56 : vector<8x32xf32>
    %58 = arith.mulf %53, %57 : vector<8x32xf32>
    %c8 = arith.constant 8 : index
    %c0_18 = arith.constant 0 : index
    %59 = vector.load %arg10[%c8, %c0_18] : memref<64x32xf32, #tpu.memory_space<vmem>>, vector<8x32xf32>
    tpu.vector_store %arg10[%c8, %c0_18], %58 {strides = array<i32>} : memref<64x32xf32, #tpu.memory_space<vmem>>, vector<8x32xf32>,
    %60 = vector.extract_strided_slice %6 {offsets = [16, 0], sizes = [8, 128], strides = [1, 1]} : vector<64x128xf32> to vector<8x128xf32>
    %cst_19 = arith.constant dense<0.000000e+00> : vector<8x128xf32>
    %61 = tpu.matmul %58, %7, %cst_19 {dimension_numbers = #tpu.dot_dimension_numbers<[1], [0], [0], [1], [0, 0, 1, 1], [], []>} : vector<8x32xf32>, vector<32x128xf32>, vector<8x128xf32> -> vector<8x128xf32>
    %62 = arith.addf %60, %61 : vector<8x128xf32>
    %63 = vector.extract_strided_slice %62 {offsets = [0, 0], sizes = [8, 64], strides = [1, 1]} : vector<8x128xf32> to vector<8x64xf32>
    %64 = arith.negf %63 : vector<8x64xf32>
    %65 = math.exp %64 : vector<8x64xf32>
    %cst_20 = arith.constant 1.000000e+00 : f32
    %66 = vector.broadcast %cst_20 : f32 to vector<8x64xf32>
    %67 = arith.addf %66, %65 : vector<8x64xf32>
    %68 = arith.divf %66, %67 : vector<8x64xf32>
    %69 = vector.extract_strided_slice %68 {offsets = [0, 0], sizes = [8, 32], strides = [1, 1]} : vector<8x64xf32> to vector<8x32xf32>
    %70 = vector.extract_strided_slice %68 {offsets = [0, 32], sizes = [8, 32], strides = [1, 1]} : vector<8x64xf32> to vector<8x32xf32>
    %71 = vector.extract_strided_slice %62 {offsets = [0, 64], sizes = [8, 32], strides = [1, 1]} : vector<8x128xf32> to vector<8x32xf32>
    %72 = math.tanh %71 : vector<8x32xf32>
    %73 = vector.extract_strided_slice %62 {offsets = [0, 96], sizes = [8, 32], strides = [1, 1]} : vector<8x128xf32> to vector<8x32xf32>
    %74 = arith.negf %73 : vector<8x32xf32>
    %75 = math.exp %74 : vector<8x32xf32>
    %cst_21 = arith.constant 1.000000e+00 : f32
    %76 = vector.broadcast %cst_21 : f32 to vector<8x32xf32>
    %77 = arith.addf %76, %75 : vector<8x32xf32>
    %78 = arith.divf %76, %77 : vector<8x32xf32>
    %79 = arith.mulf %70, %56 : vector<8x32xf32>
    %80 = arith.mulf %69, %72 : vector<8x32xf32>
    %81 = arith.addf %79, %80 : vector<8x32xf32>
    %82 = math.tanh %81 : vector<8x32xf32>
    %83 = arith.mulf %78, %82 : vector<8x32xf32>
    %c16 = arith.constant 16 : index
    %c0_22 = arith.constant 0 : index
    %84 = vector.load %arg10[%c16, %c0_22] : memref<64x32xf32, #tpu.memory_space<vmem>>, vector<8x32xf32>
    tpu.vector_store %arg10[%c16, %c0_22], %83 {strides = array<i32>} : memref<64x32xf32, #tpu.memory_space<vmem>>, vector<8x32xf32>,
    %85 = vector.extract_strided_slice %6 {offsets = [24, 0], sizes = [8, 128], strides = [1, 1]} : vector<64x128xf32> to vector<8x128xf32>
    %cst_23 = arith.constant dense<0.000000e+00> : vector<8x128xf32>
    %86 = tpu.matmul %83, %7, %cst_23 {dimension_numbers = #tpu.dot_dimension_numbers<[1], [0], [0], [1], [0, 0, 1, 1], [], []>} : vector<8x32xf32>, vector<32x128xf32>, vector<8x128xf32> -> vector<8x128xf32>
    %87 = arith.addf %85, %86 : vector<8x128xf32>
    %88 = vector.extract_strided_slice %87 {offsets = [0, 0], sizes = [8, 64], strides = [1, 1]} : vector<8x128xf32> to vector<8x64xf32>
    %89 = arith.negf %88 : vector<8x64xf32>
    %90 = math.exp %89 : vector<8x64xf32>
    %cst_24 = arith.constant 1.000000e+00 : f32
    %91 = vector.broadcast %cst_24 : f32 to vector<8x64xf32>
    %92 = arith.addf %91, %90 : vector<8x64xf32>
    %93 = arith.divf %91, %92 : vector<8x64xf32>
    %94 = vector.extract_strided_slice %93 {offsets = [0, 0], sizes = [8, 32], strides = [1, 1]} : vector<8x64xf32> to vector<8x32xf32>
    %95 = vector.extract_strided_slice %93 {offsets = [0, 32], sizes = [8, 32], strides = [1, 1]} : vector<8x64xf32> to vector<8x32xf32>
    %96 = vector.extract_strided_slice %87 {offsets = [0, 64], sizes = [8, 32], strides = [1, 1]} : vector<8x128xf32> to vector<8x32xf32>
    %97 = math.tanh %96 : vector<8x32xf32>
    %98 = vector.extract_strided_slice %87 {offsets = [0, 96], sizes = [8, 32], strides = [1, 1]} : vector<8x128xf32> to vector<8x32xf32>
    %99 = arith.negf %98 : vector<8x32xf32>
    %100 = math.exp %99 : vector<8x32xf32>
    %cst_25 = arith.constant 1.000000e+00 : f32
    %101 = vector.broadcast %cst_25 : f32 to vector<8x32xf32>
    %102 = arith.addf %101, %100 : vector<8x32xf32>
    %103 = arith.divf %101, %102 : vector<8x32xf32>
    %104 = arith.mulf %95, %81 : vector<8x32xf32>
    %105 = arith.mulf %94, %97 : vector<8x32xf32>
    %106 = arith.addf %104, %105 : vector<8x32xf32>
    %107 = math.tanh %106 : vector<8x32xf32>
    %108 = arith.mulf %103, %107 : vector<8x32xf32>
    %c24 = arith.constant 24 : index
    %c0_26 = arith.constant 0 : index
    %109 = vector.load %arg10[%c24, %c0_26] : memref<64x32xf32, #tpu.memory_space<vmem>>, vector<8x32xf32>
    tpu.vector_store %arg10[%c24, %c0_26], %108 {strides = array<i32>} : memref<64x32xf32, #tpu.memory_space<vmem>>, vector<8x32xf32>,
    %110 = vector.extract_strided_slice %6 {offsets = [32, 0], sizes = [8, 128], strides = [1, 1]} : vector<64x128xf32> to vector<8x128xf32>
    %cst_27 = arith.constant dense<0.000000e+00> : vector<8x128xf32>
    %111 = tpu.matmul %108, %7, %cst_27 {dimension_numbers = #tpu.dot_dimension_numbers<[1], [0], [0], [1], [0, 0, 1, 1], [], []>} : vector<8x32xf32>, vector<32x128xf32>, vector<8x128xf32> -> vector<8x128xf32>
    %112 = arith.addf %110, %111 : vector<8x128xf32>
    %113 = vector.extract_strided_slice %112 {offsets = [0, 0], sizes = [8, 64], strides = [1, 1]} : vector<8x128xf32> to vector<8x64xf32>
    %114 = arith.negf %113 : vector<8x64xf32>
    %115 = math.exp %114 : vector<8x64xf32>
    %cst_28 = arith.constant 1.000000e+00 : f32
    %116 = vector.broadcast %cst_28 : f32 to vector<8x64xf32>
    %117 = arith.addf %116, %115 : vector<8x64xf32>
    %118 = arith.divf %116, %117 : vector<8x64xf32>
    %119 = vector.extract_strided_slice %118 {offsets = [0, 0], sizes = [8, 32], strides = [1, 1]} : vector<8x64xf32> to vector<8x32xf32>
    %120 = vector.extract_strided_slice %118 {offsets = [0, 32], sizes = [8, 32], strides = [1, 1]} : vector<8x64xf32> to vector<8x32xf32>
    %121 = vector.extract_strided_slice %112 {offsets = [0, 64], sizes = [8, 32], strides = [1, 1]} : vector<8x128xf32> to vector<8x32xf32>
    %122 = math.tanh %121 : vector<8x32xf32>
    %123 = vector.extract_strided_slice %112 {offsets = [0, 96], sizes = [8, 32], strides = [1, 1]} : vector<8x128xf32> to vector<8x32xf32>
    %124 = arith.negf %123 : vector<8x32xf32>
    %125 = math.exp %124 : vector<8x32xf32>
    %cst_29 = arith.constant 1.000000e+00 : f32
    %126 = vector.broadcast %cst_29 : f32 to vector<8x32xf32>
    %127 = arith.addf %126, %125 : vector<8x32xf32>
    %128 = arith.divf %126, %127 : vector<8x32xf32>
    %129 = arith.mulf %120, %106 : vector<8x32xf32>
    %130 = arith.mulf %119, %122 : vector<8x32xf32>
    %131 = arith.addf %129, %130 : vector<8x32xf32>
    %132 = math.tanh %131 : vector<8x32xf32>
    %133 = arith.mulf %128, %132 : vector<8x32xf32>
    %c32 = arith.constant 32 : index
    %c0_30 = arith.constant 0 : index
    %134 = vector.load %arg10[%c32, %c0_30] : memref<64x32xf32, #tpu.memory_space<vmem>>, vector<8x32xf32>
    tpu.vector_store %arg10[%c32, %c0_30], %133 {strides = array<i32>} : memref<64x32xf32, #tpu.memory_space<vmem>>, vector<8x32xf32>,
    %135 = vector.extract_strided_slice %6 {offsets = [40, 0], sizes = [8, 128], strides = [1, 1]} : vector<64x128xf32> to vector<8x128xf32>
    %cst_31 = arith.constant dense<0.000000e+00> : vector<8x128xf32>
    %136 = tpu.matmul %133, %7, %cst_31 {dimension_numbers = #tpu.dot_dimension_numbers<[1], [0], [0], [1], [0, 0, 1, 1], [], []>} : vector<8x32xf32>, vector<32x128xf32>, vector<8x128xf32> -> vector<8x128xf32>
    %137 = arith.addf %135, %136 : vector<8x128xf32>
    %138 = vector.extract_strided_slice %137 {offsets = [0, 0], sizes = [8, 64], strides = [1, 1]} : vector<8x128xf32> to vector<8x64xf32>
    %139 = arith.negf %138 : vector<8x64xf32>
    %140 = math.exp %139 : vector<8x64xf32>
    %cst_32 = arith.constant 1.000000e+00 : f32
    %141 = vector.broadcast %cst_32 : f32 to vector<8x64xf32>
    %142 = arith.addf %141, %140 : vector<8x64xf32>
    %143 = arith.divf %141, %142 : vector<8x64xf32>
    %144 = vector.extract_strided_slice %143 {offsets = [0, 0], sizes = [8, 32], strides = [1, 1]} : vector<8x64xf32> to vector<8x32xf32>
    %145 = vector.extract_strided_slice %143 {offsets = [0, 32], sizes = [8, 32], strides = [1, 1]} : vector<8x64xf32> to vector<8x32xf32>
    %146 = vector.extract_strided_slice %137 {offsets = [0, 64], sizes = [8, 32], strides = [1, 1]} : vector<8x128xf32> to vector<8x32xf32>
    %147 = math.tanh %146 : vector<8x32xf32>
    %148 = vector.extract_strided_slice %137 {offsets = [0, 96], sizes = [8, 32], strides = [1, 1]} : vector<8x128xf32> to vector<8x32xf32>
    %149 = arith.negf %148 : vector<8x32xf32>
    %150 = math.exp %149 : vector<8x32xf32>
    %cst_33 = arith.constant 1.000000e+00 : f32
    %151 = vector.broadcast %cst_33 : f32 to vector<8x32xf32>
    %152 = arith.addf %151, %150 : vector<8x32xf32>
    %153 = arith.divf %151, %152 : vector<8x32xf32>
    %154 = arith.mulf %145, %131 : vector<8x32xf32>
    %155 = arith.mulf %144, %147 : vector<8x32xf32>
    %156 = arith.addf %154, %155 : vector<8x32xf32>
    %157 = math.tanh %156 : vector<8x32xf32>
    %158 = arith.mulf %153, %157 : vector<8x32xf32>
    %c40 = arith.constant 40 : index
    %c0_34 = arith.constant 0 : index
    %159 = vector.load %arg10[%c40, %c0_34] : memref<64x32xf32, #tpu.memory_space<vmem>>, vector<8x32xf32>
    tpu.vector_store %arg10[%c40, %c0_34], %158 {strides = array<i32>} : memref<64x32xf32, #tpu.memory_space<vmem>>, vector<8x32xf32>,
    %160 = vector.extract_strided_slice %6 {offsets = [48, 0], sizes = [8, 128], strides = [1, 1]} : vector<64x128xf32> to vector<8x128xf32>
    %cst_35 = arith.constant dense<0.000000e+00> : vector<8x128xf32>
    %161 = tpu.matmul %158, %7, %cst_35 {dimension_numbers = #tpu.dot_dimension_numbers<[1], [0], [0], [1], [0, 0, 1, 1], [], []>} : vector<8x32xf32>, vector<32x128xf32>, vector<8x128xf32> -> vector<8x128xf32>
    %162 = arith.addf %160, %161 : vector<8x128xf32>
    %163 = vector.extract_strided_slice %162 {offsets = [0, 0], sizes = [8, 64], strides = [1, 1]} : vector<8x128xf32> to vector<8x64xf32>
    %164 = arith.negf %163 : vector<8x64xf32>
    %165 = math.exp %164 : vector<8x64xf32>
    %cst_36 = arith.constant 1.000000e+00 : f32
    %166 = vector.broadcast %cst_36 : f32 to vector<8x64xf32>
    %167 = arith.addf %166, %165 : vector<8x64xf32>
    %168 = arith.divf %166, %167 : vector<8x64xf32>
    %169 = vector.extract_strided_slice %168 {offsets = [0, 0], sizes = [8, 32], strides = [1, 1]} : vector<8x64xf32> to vector<8x32xf32>
    %170 = vector.extract_strided_slice %168 {offsets = [0, 32], sizes = [8, 32], strides = [1, 1]} : vector<8x64xf32> to vector<8x32xf32>
    %171 = vector.extract_strided_slice %162 {offsets = [0, 64], sizes = [8, 32], strides = [1, 1]} : vector<8x128xf32> to vector<8x32xf32>
    %172 = math.tanh %171 : vector<8x32xf32>
    %173 = vector.extract_strided_slice %162 {offsets = [0, 96], sizes = [8, 32], strides = [1, 1]} : vector<8x128xf32> to vector<8x32xf32>
    %174 = arith.negf %173 : vector<8x32xf32>
    %175 = math.exp %174 : vector<8x32xf32>
    %cst_37 = arith.constant 1.000000e+00 : f32
    %176 = vector.broadcast %cst_37 : f32 to vector<8x32xf32>
    %177 = arith.addf %176, %175 : vector<8x32xf32>
    %178 = arith.divf %176, %177 : vector<8x32xf32>
    %179 = arith.mulf %170, %156 : vector<8x32xf32>
    %180 = arith.mulf %169, %172 : vector<8x32xf32>
    %181 = arith.addf %179, %180 : vector<8x32xf32>
    %182 = math.tanh %181 : vector<8x32xf32>
    %183 = arith.mulf %178, %182 : vector<8x32xf32>
    %c48 = arith.constant 48 : index
    %c0_38 = arith.constant 0 : index
    %184 = vector.load %arg10[%c48, %c0_38] : memref<64x32xf32, #tpu.memory_space<vmem>>, vector<8x32xf32>
    tpu.vector_store %arg10[%c48, %c0_38], %183 {strides = array<i32>} : memref<64x32xf32, #tpu.memory_space<vmem>>, vector<8x32xf32>,
    %185 = vector.extract_strided_slice %6 {offsets = [56, 0], sizes = [8, 128], strides = [1, 1]} : vector<64x128xf32> to vector<8x128xf32>
    %cst_39 = arith.constant dense<0.000000e+00> : vector<8x128xf32>
    %186 = tpu.matmul %183, %7, %cst_39 {dimension_numbers = #tpu.dot_dimension_numbers<[1], [0], [0], [1], [0, 0, 1, 1], [], []>} : vector<8x32xf32>, vector<32x128xf32>, vector<8x128xf32> -> vector<8x128xf32>
    %187 = arith.addf %185, %186 : vector<8x128xf32>
    %188 = vector.extract_strided_slice %187 {offsets = [0, 0], sizes = [8, 64], strides = [1, 1]} : vector<8x128xf32> to vector<8x64xf32>
    %189 = arith.negf %188 : vector<8x64xf32>
    %190 = math.exp %189 : vector<8x64xf32>
    %cst_40 = arith.constant 1.000000e+00 : f32
    %191 = vector.broadcast %cst_40 : f32 to vector<8x64xf32>
    %192 = arith.addf %191, %190 : vector<8x64xf32>
    %193 = arith.divf %191, %192 : vector<8x64xf32>
    %194 = vector.extract_strided_slice %193 {offsets = [0, 0], sizes = [8, 32], strides = [1, 1]} : vector<8x64xf32> to vector<8x32xf32>
    %195 = vector.extract_strided_slice %193 {offsets = [0, 32], sizes = [8, 32], strides = [1, 1]} : vector<8x64xf32> to vector<8x32xf32>
    %196 = vector.extract_strided_slice %187 {offsets = [0, 64], sizes = [8, 32], strides = [1, 1]} : vector<8x128xf32> to vector<8x32xf32>
    %197 = math.tanh %196 : vector<8x32xf32>
    %198 = vector.extract_strided_slice %187 {offsets = [0, 96], sizes = [8, 32], strides = [1, 1]} : vector<8x128xf32> to vector<8x32xf32>
    %199 = arith.negf %198 : vector<8x32xf32>
    %200 = math.exp %199 : vector<8x32xf32>
    %cst_41 = arith.constant 1.000000e+00 : f32
    %201 = vector.broadcast %cst_41 : f32 to vector<8x32xf32>
    %202 = arith.addf %201, %200 : vector<8x32xf32>
    %203 = arith.divf %201, %202 : vector<8x32xf32>
    %204 = arith.mulf %195, %181 : vector<8x32xf32>
    %205 = arith.mulf %194, %197 : vector<8x32xf32>
    %206 = arith.addf %204, %205 : vector<8x32xf32>
    %207 = math.tanh %206 : vector<8x32xf32>
    %208 = arith.mulf %203, %207 : vector<8x32xf32>
    %c56 = arith.constant 56 : index
    %c0_42 = arith.constant 0 : index
    %209 = vector.load %arg10[%c56, %c0_42] : memref<64x32xf32, #tpu.memory_space<vmem>>, vector<8x32xf32>
    tpu.vector_store %arg10[%c56, %c0_42], %208 {strides = array<i32>} : memref<64x32xf32, #tpu.memory_space<vmem>>, vector<8x32xf32>,
    %c0_43 = arith.constant 0 : index
    %c0_44 = arith.constant 0 : index
    %210 = vector.load %arg10[%c0_43, %c0_44] : memref<64x32xf32, #tpu.memory_space<vmem>>, vector<64x32xf32>
    %c0_45 = arith.constant 0 : index
    %c0_46 = arith.constant 0 : index
    %211 = vector.load %arg5[%c0_45, %c0_46] : memref<32x32xf32, #tpu.memory_space<vmem>>, vector<32x32xf32>
    %cst_47 = arith.constant dense<0.000000e+00> : vector<64x32xf32>
    %212 = tpu.matmul %210, %211, %cst_47 {dimension_numbers = #tpu.dot_dimension_numbers<[1], [0], [0], [1], [0, 0, 1, 1], [], []>} : vector<64x32xf32>, vector<32x32xf32>, vector<64x32xf32> -> vector<64x32xf32>
    %c0_48 = arith.constant 0 : index
    %c0_49 = arith.constant 0 : index
    %213 = vector.load %arg6[%c0_48, %c0_49] : memref<1x32xf32, #tpu.memory_space<vmem>>, vector<1x32xf32>
    %214 = vector.broadcast %213 : vector<1x32xf32> to vector<64x32xf32>
    %215 = arith.addf %212, %214 : vector<64x32xf32>
    %cst_50 = arith.constant 0.000000e+00 : f32
    %216 = vector.broadcast %cst_50 : f32 to vector<64x32xf32>
    %217 = arith.maximumf %215, %216 : vector<64x32xf32>
    %c0_51 = arith.constant 0 : index
    %c0_52 = arith.constant 0 : index
    %218 = vector.load %arg7[%c0_51, %c0_52] : memref<32x128xf32, #tpu.memory_space<vmem>>, vector<32x128xf32>
    %cst_53 = arith.constant dense<0.000000e+00> : vector<64x128xf32>
    %219 = tpu.matmul %217, %218, %cst_53 {dimension_numbers = #tpu.dot_dimension_numbers<[1], [0], [0], [1], [0, 0, 1, 1], [], []>} : vector<64x32xf32>, vector<32x128xf32>, vector<64x128xf32> -> vector<64x128xf32>
    %c0_54 = arith.constant 0 : index
    %c0_55 = arith.constant 0 : index
    %220 = vector.load %arg8[%c0_54, %c0_55] : memref<1x128xf32, #tpu.memory_space<vmem>>, vector<1x128xf32>
    %221 = vector.broadcast %220 : vector<1x128xf32> to vector<64x128xf32>
    %222 = arith.addf %219, %221 : vector<64x128xf32>
    %223 = arith.negf %222 : vector<64x128xf32>
    %224 = math.exp %223 : vector<64x128xf32>
    %cst_56 = arith.constant 1.000000e+00 : f32
    %225 = vector.broadcast %cst_56 : f32 to vector<64x128xf32>
    %226 = arith.addf %225, %224 : vector<64x128xf32>
    %227 = arith.divf %225, %226 : vector<64x128xf32>
    %c0_57 = arith.constant 0 : index
    %c0_58 = arith.constant 0 : index
    %c0_59 = arith.constant 0 : index
    %228 = vector.load %arg9[%c0_57, %c0_58, %c0_59] : memref<1x64x128xf32, #tpu.memory_space<vmem>>, vector<1x64x128xf32>
    %229 = vector.shape_cast %228 : vector<1x64x128xf32> to vector<64x128xf32>
    %230 = vector.shape_cast %227 : vector<64x128xf32> to vector<1x64x128xf32>
    tpu.vector_store %arg9[%c0_57, %c0_58, %c0_59], %230 {strides = array<i32>} : memref<1x64x128xf32, #tpu.memory_space<vmem>>, vector<1x64x128xf32>,
    return
  }
  func.func @transform_0(%arg0: i32) -> (i32, i32, i32) {
    %c0_i32 = arith.constant 0 : i32
    %c0_i32_0 = arith.constant 0 : i32
    %c0_i32_1 = arith.constant 0 : i32
    return %arg0, %c0_i32, %c0_i32_0 : i32, i32, i32
  }
  func.func @transform_1(%arg0: i32) -> (i32, i32) {
    %c0_i32 = arith.constant 0 : i32
    %c0_i32_0 = arith.constant 0 : i32
    %c0_i32_1 = arith.constant 0 : i32
    return %c0_i32, %c0_i32_0 : i32, i32
  }
  func.func @transform_2(%arg0: i32) -> (i32, i32) {
    %c0_i32 = arith.constant 0 : i32
    %c0_i32_0 = arith.constant 0 : i32
    %c0_i32_1 = arith.constant 0 : i32
    return %c0_i32, %c0_i32_0 : i32, i32
  }
  func.func @transform_3(%arg0: i32) -> (i32, i32) {
    %c0_i32 = arith.constant 0 : i32
    %c0_i32_0 = arith.constant 0 : i32
    %c0_i32_1 = arith.constant 0 : i32
    return %c0_i32, %c0_i32_0 : i32, i32
  }
  func.func @transform_4(%arg0: i32) -> (i32, i32) {
    %c0_i32 = arith.constant 0 : i32
    %c0_i32_0 = arith.constant 0 : i32
    %c0_i32_1 = arith.constant 0 : i32
    return %c0_i32, %c0_i32_0 : i32, i32
  }
  func.func @transform_5(%arg0: i32) -> (i32, i32) {
    %c0_i32 = arith.constant 0 : i32
    %c0_i32_0 = arith.constant 0 : i32
    %c0_i32_1 = arith.constant 0 : i32
    return %c0_i32, %c0_i32_0 : i32, i32
  }
  func.func @transform_6(%arg0: i32) -> (i32, i32) {
    %c0_i32 = arith.constant 0 : i32
    %c0_i32_0 = arith.constant 0 : i32
    %c0_i32_1 = arith.constant 0 : i32
    return %c0_i32, %c0_i32_0 : i32, i32
  }
  func.func @transform_7(%arg0: i32) -> (i32, i32) {
    %c0_i32 = arith.constant 0 : i32
    %c0_i32_0 = arith.constant 0 : i32
    %c0_i32_1 = arith.constant 0 : i32
    return %c0_i32, %c0_i32_0 : i32, i32
  }
  func.func @transform_8(%arg0: i32) -> (i32, i32, i32) {
    %c0_i32 = arith.constant 0 : i32
    %c0_i32_0 = arith.constant 0 : i32
    %c0_i32_1 = arith.constant 0 : i32
    return %arg0, %c0_i32, %c0_i32_0 : i32, i32, i32
  }
}

</mosaic_0001>

<llo_original>
// kernel: tpu_custom_call.1
$region0: #{tpu_custom_call.1}
  #allocation0 [shape = 'u32[]', space=smem, size = 0x4, offset = 0x4, fixed_abs, tag = 'smem constant byte address 0x4 - core index']
  #allocation1 [shape = 'u32[144,128]{1,0:T(1,128)}', space=vmem, size = 0x12000, scoped, tag = 'internal scratch']
  #allocation2 [shape = 'f32[64,32]{1,0:T(8,128)}', space=vmem, size = 0x8000, scoped, tag = 'scratch operand']
  %s0 = inlined_call_operand.vmem [shape: f32[1,64,32], index: 0, kind: input, shape index: {}]
  %s1 = inlined_call_operand.vmem [shape: f32[32,128], index: 1, kind: input, shape index: {}]
  %s2 = inlined_call_operand.vmem [shape: f32[32,128], index: 2, kind: input, shape index: {}]
  %s3 = inlined_call_operand.vmem [shape: f32[1,128], index: 3, kind: input, shape index: {}]
  %s4 = inlined_call_operand.vmem [shape: f32[32,32], index: 4, kind: input, shape index: {}]
  %s5 = inlined_call_operand.vmem [shape: f32[1,32], index: 5, kind: input, shape index: {}]
  %s6 = inlined_call_operand.hbm [shape: f32[32,128], index: 6, kind: input, shape index: {}]
  %s7 = inlined_call_operand.vmem [shape: f32[1,128], index: 7, kind: input, shape index: {}]
  %s8 = inlined_call_operand.hbm [shape: f32[1,64,128], index: 8, kind: output, shape index: {}]
  %s9 = sld [smem:[#allocation0]]
  $region46: #{tpu_custom_call.1} parent=0
    _
  %s11 = ssub.s32 1, %s9
  %s12 = scalar_select 0, %s11, %s9
  $region1: #{tpu_custom_call.1} parent=0
    #allocation3 [shape = 'u8[16384]{0}', space=vmem, size = 0x4000, scoped, tag = 'input window, operand 6, single buffered']
    #allocation4 [shape = 's32[1]{0}', space=sflag, size = 0x4, scoped, tag = 'scoped memory for tpu_custom_call.1']
    #allocation5 [shape = 's32[1]{0}', space=sflag, size = 0x4, scoped, tag = 'scoped memory for tpu_custom_call.1']
    #allocation6 [shape = 'u8[32768]{0}', space=vmem, size = 0x8000, scoped, tag = 'output window, operand 0, single buffered']
    %13 = vsyncpa [#allocation4], 0
    %14 = vsyncpa [#allocation5], 0
    // Predicated region
    $region2: #{tpu_custom_call.1} parent=1 // pred_check
      _
    $region3: #{tpu_custom_call.1} parent=1 // pred_check_branch
      %16 = sbr.rel (0) target = $region5
    $region4: #{tpu_custom_call.1} parent=1 // pred_region
      _
    $region5: #{tpu_custom_call.1} parent=1 // pred_fallthru
      _
    // Predicated region
    $region6: #{tpu_custom_call.1} parent=1 // pred_check
      _
    $region7: #{tpu_custom_call.1} parent=1 // pred_check_branch
      %18 = sbr.rel (0) target = $region9
    $region8: #{tpu_custom_call.1} parent=1 // pred_region
      _
    $region9: #{tpu_custom_call.1} parent=1 // pred_fallthru
      _
    // Predicated region
    $region10: #{tpu_custom_call.1} parent=1 // pred_check
      _
    $region11: #{tpu_custom_call.1} parent=1 // pred_check_branch
      %20 = sbr.rel (0) target = $region13
    $region12: #{tpu_custom_call.1} parent=1 // pred_region
      _
    $region13: #{tpu_custom_call.1} parent=1 // pred_fallthru
      _
    // Predicated region
    $region14: #{tpu_custom_call.1} parent=1 // pred_check
      _
    $region15: #{tpu_custom_call.1} parent=1 // pred_check_branch
      %22 = sbr.rel (0) target = $region17
    $region16: #{tpu_custom_call.1} parent=1 // pred_region
      _
    $region17: #{tpu_custom_call.1} parent=1 // pred_fallthru
      _
    // Predicated region
    $region18: #{tpu_custom_call.1} parent=1 // pred_check
      _
    $region19: #{tpu_custom_call.1} parent=1 // pred_check_branch
      %24 = sbr.rel (0) target = $region21
    $region20: #{tpu_custom_call.1} parent=1 // pred_region
      _
    $region21: #{tpu_custom_call.1} parent=1 // pred_fallthru
      _
    // Predicated region
    $region22: #{tpu_custom_call.1} parent=1 // pred_check
      _
    $region23: #{tpu_custom_call.1} parent=1 // pred_check_branch
      %26 = sbr.rel (0) target = $region25
    $region24: #{tpu_custom_call.1} parent=1 // pred_region
      _
    $region25: #{tpu_custom_call.1} parent=1 // pred_fallthru
      _
    // Predicated region
    $region26: #{tpu_custom_call.1} parent=1 // pred_check
      _
    $region27: #{tpu_custom_call.1} parent=1 // pred_check_branch
      %28 = sbr.rel (0) target = $region29
    $region28: #{tpu_custom_call.1} parent=1 // pred_region
      %s30 = ssub.s32 512, 512
      %31 = vsyncadd [#allocation4], %s30
      %s32 = sshll.u32 [#allocation3], 4
      %s33 = int_to_ptr.vmem [resolvable:$true] %s32
      %38 = dma.hbm_to_vmem [thread:$0]  %s6, 512, %s33, [#allocation4], 128, 128, 8
    $region29: #{tpu_custom_call.1} parent=1 // pred_fallthru
      _
    // Predicated region
    $region30: #{tpu_custom_call.1} parent=1 // pred_check
      _
    $region31: #{tpu_custom_call.1} parent=1 // pred_check_branch
      %40 = sbr.rel (0) target = $region33
    $region32: #{tpu_custom_call.1} parent=1 // pred_region
      _
    $region33: #{tpu_custom_call.1} parent=1 // pred_fallthru
      _
    // Predicated region
    $region34: #{tpu_custom_call.1} parent=1 // pred_check
      _
    $region35: #{tpu_custom_call.1} parent=1 // pred_check_branch
      %42 = sbr.rel (0) target = $region37
    $region36: #{tpu_custom_call.1} parent=1 // pred_region
      %43 = dma.done [#allocation4], 512
    $region37: #{tpu_custom_call.1} parent=1 // pred_fallthru
      _
    %v44 = vld [vmem:[%s0] sm:$0xff]
    %v45 = vld [vmem:[%s0 + $0x8] sm:$0xff]
    %v46 = vld [vmem:[%s0 + $0x10] sm:$0xff]
    %v47 = vld [vmem:[%s0 + $0x18] sm:$0xff]
    %v48 = vld [vmem:[%s0 + $0x20] sm:$0xff]
    %v49 = vld [vmem:[%s0 + $0x28] sm:$0xff]
    %v50 = vld [vmem:[%s0 + $0x30] sm:$0xff]
    %v51 = vld [vmem:[%s0 + $0x38] sm:$0xff]
    %v52 = vld [vmem:[%s1] sm:$0xff]
    %v53 = vld [vmem:[%s1 + $0x8] sm:$0xff]
    %v54 = vld [vmem:[%s1 + $0x10] sm:$0xff]
    %v55 = vld [vmem:[%s1 + $0x18] sm:$0xff]
    %v56 = vld [vmem:[%s3] sm:$0x1]
    %v58 = vlaneseq
    %v59 = vshrl.u32 %v58, 7
    %v60 = vsub.s32 0, %v59
    %v61 = vrot.slane %v56, %v60
    %vm63 = vcmask 261120
    %v65 = vsel %vm63, %v44, 0
    %v68 = vsel %vm63, %v45, 0
    %v71 = vsel %vm63, %v46, 0
    %v74 = vsel %vm63, %v47, 0
    %v77 = vsel %vm63, %v48, 0
    %v80 = vsel %vm63, %v49, 0
    %v83 = vsel %vm63, %v50, 0
    %v86 = vsel %vm63, %v51, 0
    %88 = vmatprep.subr.mxu0 0.0
    %89 = vmatpush1.msra.mxu0 %v52
    %90 = vmatprep.subr.mxu0 0.0
    %91 = vmatpush1.msra.mxu0 %v53
    %92 = vmatprep.subr.mxu0 0.0
    %93 = vmatpush1.msra.mxu0 %v54
    %94 = vmatprep.subr.mxu0 0.0
    %95 = vmatpush1.msra.mxu0 %v55
    %96 = vmatprep.subr.mxu0 0.0
    %97 = vmatpush1.msra.mxu0 0.0
    %98 = vmatprep.subr.mxu0 0.0
    %99 = vmatpush1.msra.mxu0 0.0
    %100 = vmatprep.subr.mxu0 0.0
    %101 = vmatpush1.msra.mxu0 0.0
    %102 = vmatprep.subr.mxu0 0.0
    %103 = vmatpush1.msra.mxu0 0.0
    %104 = vmatprep.subr.mxu0 0.0
    %105 = vmatpush1.msra.mxu0 0.0
    %106 = vmatprep.subr.mxu0 0.0
    %107 = vmatpush1.msra.mxu0 0.0
    %108 = vmatprep.subr.mxu0 0.0
    %109 = vmatpush1.msra.mxu0 0.0
    %110 = vmatprep.subr.mxu0 0.0
    %111 = vmatpush1.msra.mxu0 0.0
    %112 = vmatprep.subr.mxu0 0.0
    %113 = vmatpush1.msra.mxu0 0.0
    %114 = vmatprep.subr.mxu0 0.0
    %115 = vmatpush1.msra.mxu0 0.0
    %116 = vmatprep.subr.mxu0 0.0
    %117 = vmatpush1.msra.mxu0 0.0
    %118 = vmatprep.subr.mxu0 0.0
    %119 = vmatpush1.msra.mxu0 0.0
    %120 = vmatprep.subr.mxu0 0.0
    %121 = vmatpush1.msra.mxu0 0.0
    %122 = vmatprep.subr.mxu0 0.0
    %123 = vmatpush1.msra.mxu0 0.0
    %124 = vmatprep.subr.mxu0 0.0
    %125 = vmatpush1.msra.mxu0 0.0
    %126 = vmatprep.subr.mxu0 0.0
    %127 = vmatpush1.msra.mxu0 0.0
    %128 = vmatprep.subr.mxu0 0.0
    %129 = vmatpush1.msra.mxu0 0.0
    %130 = vmatprep.subr.mxu0 0.0
    %131 = vmatpush1.msra.mxu0 0.0
    %132 = vmatprep.subr.mxu0 0.0
    %133 = vmatpush1.msra.mxu0 0.0
    %134 = vmatprep.subr.mxu0 0.0
    %135 = vmatpush1.msra.mxu0 0.0
    %136 = vmatprep.subr.mxu0 0.0
    %137 = vmatpush1.msra.mxu0 0.0
    %138 = vmatprep.subr.mxu0 0.0
    %139 = vmatpush1.msra.mxu0 0.0
    %140 = vmatprep.subr.mxu0 0.0
    %141 = vmatpush1.msra.mxu0 0.0
    %142 = vmatprep.subr.mxu0 0.0
    %143 = vmatpush1.msra.mxu0 0.0
    %144 = vmatprep.subr.mxu0 0.0
    %145 = vmatpush1.msra.mxu0 0.0
    %146 = vmatprep.subr.mxu0 0.0
    %147 = vmatpush1.msra.mxu0 0.0
    %148 = vmatprep.subr.mxu0 0.0
    %149 = vmatpush1.msra.mxu0 0.0
    %150 = vmatprep.subr.mxu0 0.0
    %151 = vmatpush1.msra.mxu0 0.0
    %152 = vmatprep.mubr.f32.mxu0 0.0
    %153 = vmatmul.mubr.f32.gmra.mrb[0].mxu0 %v65
    %v154 = vpop.f32.mrb[0].mxu0
    %v155 = vadd.f32 %v61, %v154
    %v156 = vpop.f32.mrb[0].mxu0
    %157 = vmatprep.mubr.f32.mxu0 0.0
    %158 = vmatmul.mubr.f32.gmra.mrb[0].mxu0 %v68
    %v159 = vpop.f32.mrb[0].mxu0
    %v160 = vadd.f32 %v61, %v159
    %v161 = vpop.f32.mrb[0].mxu0
    %162 = vmatprep.mubr.f32.mxu0 0.0
    %163 = vmatmul.mubr.f32.gmra.mrb[0].mxu0 %v71
    %v164 = vpop.f32.mrb[0].mxu0
    %v165 = vadd.f32 %v61, %v164
    %v166 = vpop.f32.mrb[0].mxu0
    %167 = vmatprep.mubr.f32.mxu0 0.0
    %168 = vmatmul.mubr.f32.gmra.mrb[0].mxu0 %v74
    %v169 = vpop.f32.mrb[0].mxu0
    %v170 = vadd.f32 %v61, %v169
    %v171 = vpop.f32.mrb[0].mxu0
    %172 = vmatprep.mubr.f32.mxu0 0.0
    %173 = vmatmul.mubr.f32.gmra.mrb[0].mxu0 %v77
    %v174 = vpop.f32.mrb[0].mxu0
    %v175 = vadd.f32 %v61, %v174
    %v176 = vpop.f32.mrb[0].mxu0
    %177 = vmatprep.mubr.f32.mxu0 0.0
    %178 = vmatmul.mubr.f32.gmra.mrb[0].mxu0 %v80
    %v179 = vpop.f32.mrb[0].mxu0
    %v180 = vadd.f32 %v61, %v179
    %v181 = vpop.f32.mrb[0].mxu0
    %182 = vmatprep.mubr.f32.mxu0 0.0
    %183 = vmatmul.mubr.f32.gmra.mrb[0].mxu0 %v83
    %v184 = vpop.f32.mrb[0].mxu0
    %v185 = vadd.f32 %v61, %v184
    %v186 = vpop.f32.mrb[0].mxu0
    %187 = vmatprep.mubr.f32.mxu0 0.0
    %188 = vmatmul.mubr.f32.gmra.mrb[0].mxu0 %v86
    %v189 = vpop.f32.mrb[0].mxu0
    %v190 = vadd.f32 %v61, %v189
    %v191 = vpop.f32.mrb[0].mxu0
    %192 = vdwg.mxu0
    %v193 = vld [vmem:[%s2] sm:$0xff]
    %v194 = vld [vmem:[%s2 + $0x8] sm:$0xff]
    %v195 = vld [vmem:[%s2 + $0x10] sm:$0xff]
    %v196 = vld [vmem:[%s2 + $0x18] sm:$0xff]
    %v198 = vsel %vm63, 0.0, 0
    %200 = vmatprep.subr.mxu0 0.0
    %201 = vmatpush1.msra.mxu0 %v193
    %202 = vmatprep.subr.mxu0 0.0
    %203 = vmatpush1.msra.mxu0 %v194
    %204 = vmatprep.subr.mxu0 0.0
    %205 = vmatpush1.msra.mxu0 %v195
    %206 = vmatprep.subr.mxu0 0.0
    %207 = vmatpush1.msra.mxu0 %v196
    %208 = vmatprep.subr.mxu0 0.0
    %209 = vmatpush1.msra.mxu0 0.0
    %210 = vmatprep.subr.mxu0 0.0
    %211 = vmatpush1.msra.mxu0 0.0
    %212 = vmatprep.subr.mxu0 0.0
    %213 = vmatpush1.msra.mxu0 0.0
    %214 = vmatprep.subr.mxu0 0.0
    %215 = vmatpush1.msra.mxu0 0.0
    %216 = vmatprep.subr.mxu0 0.0
    %217 = vmatpush1.msra.mxu0 0.0
    %218 = vmatprep.subr.mxu0 0.0
    %219 = vmatpush1.msra.mxu0 0.0
    %220 = vmatprep.subr.mxu0 0.0
    %221 = vmatpush1.msra.mxu0 0.0
    %222 = vmatprep.subr.mxu0 0.0
    %223 = vmatpush1.msra.mxu0 0.0
    %224 = vmatprep.subr.mxu0 0.0
    %225 = vmatpush1.msra.mxu0 0.0
    %226 = vmatprep.subr.mxu0 0.0
    %227 = vmatpush1.msra.mxu0 0.0
    %228 = vmatprep.subr.mxu0 0.0
    %229 = vmatpush1.msra.mxu0 0.0
    %230 = vmatprep.subr.mxu0 0.0
    %231 = vmatpush1.msra.mxu0 0.0
    %232 = vmatprep.subr.mxu0 0.0
    %233 = vmatpush1.msra.mxu0 0.0
    %234 = vmatprep.subr.mxu0 0.0
    %235 = vmatpush1.msra.mxu0 0.0
    %236 = vmatprep.subr.mxu0 0.0
    %237 = vmatpush1.msra.mxu0 0.0
    %238 = vmatprep.subr.mxu0 0.0
    %239 = vmatpush1.msra.mxu0 0.0
    %240 = vmatprep.subr.mxu0 0.0
    %241 = vmatpush1.msra.mxu0 0.0
    %242 = vmatprep.subr.mxu0 0.0
    %243 = vmatpush1.msra.mxu0 0.0
    %244 = vmatprep.subr.mxu0 0.0
    %245 = vmatpush1.msra.mxu0 0.0
    %246 = vmatprep.subr.mxu0 0.0
    %247 = vmatpush1.msra.mxu0 0.0
    %248 = vmatprep.subr.mxu0 0.0
    %249 = vmatpush1.msra.mxu0 0.0
    %250 = vmatprep.subr.mxu0 0.0
    %251 = vmatpush1.msra.mxu0 0.0
    %252 = vmatprep.subr.mxu0 0.0
    %253 = vmatpush1.msra.mxu0 0.0
    %254 = vmatprep.subr.mxu0 0.0
    %255 = vmatpush1.msra.mxu0 0.0
    %256 = vmatprep.subr.mxu0 0.0
    %257 = vmatpush1.msra.mxu0 0.0
    %258 = vmatprep.subr.mxu0 0.0
    %259 = vmatpush1.msra.mxu0 0.0
    %260 = vmatprep.subr.mxu0 0.0
    %261 = vmatpush1.msra.mxu0 0.0
    %262 = vmatprep.subr.mxu0 0.0
    %263 = vmatpush1.msra.mxu0 0.0
    %264 = vmatprep.mubr.f32.mxu0 0.0
    %265 = vmatmul.mubr.f32.gmra.mrb[0].mxu0 %v198
    %v266 = vpop.f32.mrb[0].mxu0
    %v267 = vadd.f32 0.0, %v266
    %v268 = vpop.f32.mrb[0].mxu0
    %269 = vdwg.mxu0
    %v270 = vadd.f32 %v155, %v267
    %v271 = vxor.u32 %v270, 2147483648
    %v272 = vmul.f32 %v271, 1.442695
    %v273 = vpow.pop %v272
    %v274 = vadd.f32 %v273, 1.0
    %v275 = vrcp.pop %v274
    %v276 = vmul.f32 1.0, %v275
    %v277 = vtanh.pop %v270
    %v278 = vmul.f32 %v276, 0.0
    %280 = vrot.lane.b32.xlu0 %v277, 64
    %v281 = vpop.permute.xlu0 %280
    %v283 = vmul.f32 %v276, %v281
    %285 = vrot.lane.b32.xlu0 %v283, 32
    %v286 = vpop.permute.xlu0 %285
    %v288 = vadd.f32 %v278, %v286
    %v289 = vtanh.pop %v288
    %291 = vrot.lane.b32.xlu0 %v289, 64
    %v292 = vpop.permute.xlu0 %291
    %v294 = vmul.f32 %v276, %v292
    %296 = vrot.lane.b32.xlu0 %v294, 32
    %v297 = vpop.permute.xlu0 %296
    %299 = vst.msk [vmem:[#allocation2] sm:$0xff] %vm63, %v297
    %v300 = vsel %vm63, %v297, 0
    %302 = vmatprep.subr.mxu0 0.0
    %303 = vmatpush1.msra.mxu0 %v193
    %304 = vmatprep.subr.mxu0 0.0
    %305 = vmatpush1.msra.mxu0 %v194
    %306 = vmatprep.subr.mxu0 0.0
    %307 = vmatpush1.msra.mxu0 %v195
    %308 = vmatprep.subr.mxu0 0.0
    %309 = vmatpush1.msra.mxu0 %v196
    %310 = vmatprep.subr.mxu0 0.0
    %311 = vmatpush1.msra.mxu0 0.0
    %312 = vmatprep.subr.mxu0 0.0
    %313 = vmatpush1.msra.mxu0 0.0
    %314 = vmatprep.subr.mxu0 0.0
    %315 = vmatpush1.msra.mxu0 0.0
    %316 = vmatprep.subr.mxu0 0.0
    %317 = vmatpush1.msra.mxu0 0.0
    %318 = vmatprep.subr.mxu0 0.0
    %319 = vmatpush1.msra.mxu0 0.0
    %320 = vmatprep.subr.mxu0 0.0
    %321 = vmatpush1.msra.mxu0 0.0
    %322 = vmatprep.subr.mxu0 0.0
    %323 = vmatpush1.msra.mxu0 0.0
    %324 = vmatprep.subr.mxu0 0.0
    %325 = vmatpush1.msra.mxu0 0.0
    %326 = vmatprep.subr.mxu0 0.0
    %327 = vmatpush1.msra.mxu0 0.0
    %328 = vmatprep.subr.mxu0 0.0
    %329 = vmatpush1.msra.mxu0 0.0
    %330 = vmatprep.subr.mxu0 0.0
    %331 = vmatpush1.msra.mxu0 0.0
    %332 = vmatprep.subr.mxu0 0.0
    %333 = vmatpush1.msra.mxu0 0.0
    %334 = vmatprep.subr.mxu0 0.0
    %335 = vmatpush1.msra.mxu0 0.0
    %336 = vmatprep.subr.mxu0 0.0
    %337 = vmatpush1.msra.mxu0 0.0
    %338 = vmatprep.subr.mxu0 0.0
    %339 = vmatpush1.msra.mxu0 0.0
    %340 = vmatprep.subr.mxu0 0.0
    %341 = vmatpush1.msra.mxu0 0.0
    %342 = vmatprep.subr.mxu0 0.0
    %343 = vmatpush1.msra.mxu0 0.0
    %344 = vmatprep.subr.mxu0 0.0
    %345 = vmatpush1.msra.mxu0 0.0
    %346 = vmatprep.subr.mxu0 0.0
    %347 = vmatpush1.msra.mxu0 0.0
    %348 = vmatprep.subr.mxu0 0.0
    %349 = vmatpush1.msra.mxu0 0.0
    %350 = vmatprep.subr.mxu0 0.0
    %351 = vmatpush1.msra.mxu0 0.0
    %352 = vmatprep.subr.mxu0 0.0
    %353 = vmatpush1.msra.mxu0 0.0
    %354 = vmatprep.subr.mxu0 0.0
    %355 = vmatpush1.msra.mxu0 0.0
    %356 = vmatprep.subr.mxu0 0.0
    %357 = vmatpush1.msra.mxu0 0.0
    %358 = vmatprep.subr.mxu0 0.0
    %359 = vmatpush1.msra.mxu0 0.0
    %360 = vmatprep.subr.mxu0 0.0
    %361 = vmatpush1.msra.mxu0 0.0
    %362 = vmatprep.subr.mxu0 0.0
    %363 = vmatpush1.msra.mxu0 0.0
    %364 = vmatprep.subr.mxu0 0.0
    %365 = vmatpush1.msra.mxu0 0.0
    %366 = vmatprep.mubr.f32.mxu0 0.0
    %367 = vmatmul.mubr.f32.gmra.mrb[0].mxu0 %v300
    %v368 = vpop.f32.mrb[0].mxu0
    %v369 = vadd.f32 0.0, %v368
    %v370 = vpop.f32.mrb[0].mxu0
    %371 = vdwg.mxu0
    %v372 = vadd.f32 %v160, %v369
    %v373 = vxor.u32 %v372, 2147483648
    %v374 = vmul.f32 %v373, 1.442695
    %v375 = vpow.pop %v374
    %v376 = vadd.f32 %v375, 1.0
    %v377 = vrcp.pop %v376
    %v378 = vmul.f32 1.0, %v377
    %v379 = vtanh.pop %v372
    %v380 = vmul.f32 %v378, %v288
    %382 = vrot.lane.b32.xlu0 %v379, 64
    %v383 = vpop.permute.xlu0 %382
    %v385 = vmul.f32 %v378, %v383
    %387 = vrot.lane.b32.xlu0 %v385, 32
    %v388 = vpop.permute.xlu0 %387
    %v390 = vadd.f32 %v380, %v388
    %v391 = vtanh.pop %v390
    %393 = vrot.lane.b32.xlu0 %v391, 64
    %v394 = vpop.permute.xlu0 %393
    %v396 = vmul.f32 %v378, %v394
    %398 = vrot.lane.b32.xlu0 %v396, 32
    %v399 = vpop.permute.xlu0 %398
    %401 = vst.msk [vmem:[#allocation2 + $0x8] sm:$0xff] %vm63, %v399
    %v402 = vsel %vm63, %v399, 0
    %404 = vmatprep.subr.mxu0 0.0
    %405 = vmatpush1.msra.mxu0 %v193
    %406 = vmatprep.subr.mxu0 0.0
    %407 = vmatpush1.msra.mxu0 %v194
    %408 = vmatprep.subr.mxu0 0.0
    %409 = vmatpush1.msra.mxu0 %v195
    %410 = vmatprep.subr.mxu0 0.0
    %411 = vmatpush1.msra.mxu0 %v196
    %412 = vmatprep.subr.mxu0 0.0
    %413 = vmatpush1.msra.mxu0 0.0
    %414 = vmatprep.subr.mxu0 0.0
    %415 = vmatpush1.msra.mxu0 0.0
    %416 = vmatprep.subr.mxu0 0.0
    %417 = vmatpush1.msra.mxu0 0.0
    %418 = vmatprep.subr.mxu0 0.0
    %419 = vmatpush1.msra.mxu0 0.0
    %420 = vmatprep.subr.mxu0 0.0
    %421 = vmatpush1.msra.mxu0 0.0
    %422 = vmatprep.subr.mxu0 0.0
    %423 = vmatpush1.msra.mxu0 0.0
    %424 = vmatprep.subr.mxu0 0.0
    %425 = vmatpush1.msra.mxu0 0.0
    %426 = vmatprep.subr.mxu0 0.0
    %427 = vmatpush1.msra.mxu0 0.0
    %428 = vmatprep.subr.mxu0 0.0
    %429 = vmatpush1.msra.mxu0 0.0
    %430 = vmatprep.subr.mxu0 0.0
    %431 = vmatpush1.msra.mxu0 0.0
    %432 = vmatprep.subr.mxu0 0.0
    %433 = vmatpush1.msra.mxu0 0.0
    %434 = vmatprep.subr.mxu0 0.0
    %435 = vmatpush1.msra.mxu0 0.0
    %436 = vmatprep.subr.mxu0 0.0
    %437 = vmatpush1.msra.mxu0 0.0
    %438 = vmatprep.subr.mxu0 0.0
    %439 = vmatpush1.msra.mxu0 0.0
    %440 = vmatprep.subr.mxu0 0.0
    %441 = vmatpush1.msra.mxu0 0.0
    %442 = vmatprep.subr.mxu0 0.0
    %443 = vmatpush1.msra.mxu0 0.0
    %444 = vmatprep.subr.mxu0 0.0
    %445 = vmatpush1.msra.mxu0 0.0
    %446 = vmatprep.subr.mxu0 0.0
    %447 = vmatpush1.msra.mxu0 0.0
    %448 = vmatprep.subr.mxu0 0.0
    %449 = vmatpush1.msra.mxu0 0.0
    %450 = vmatprep.subr.mxu0 0.0
    %451 = vmatpush1.msra.mxu0 0.0
    %452 = vmatprep.subr.mxu0 0.0
    %453 = vmatpush1.msra.mxu0 0.0
    %454 = vmatprep.subr.mxu0 0.0
    %455 = vmatpush1.msra.mxu0 0.0
    %456 = vmatprep.subr.mxu0 0.0
    %457 = vmatpush1.msra.mxu0 0.0
    %458 = vmatprep.subr.mxu0 0.0
    %459 = vmatpush1.msra.mxu0 0.0
    %460 = vmatprep.subr.mxu0 0.0
    %461 = vmatpush1.msra.mxu0 0.0
    %462 = vmatprep.subr.mxu0 0.0
    %463 = vmatpush1.msra.mxu0 0.0
    %464 = vmatprep.subr.mxu0 0.0
    %465 = vmatpush1.msra.mxu0 0.0
    %466 = vmatprep.subr.mxu0 0.0
    %467 = vmatpush1.msra.mxu0 0.0
    %468 = vmatprep.mubr.f32.mxu0 0.0
    %469 = vmatmul.mubr.f32.gmra.mrb[0].mxu0 %v402
    %v470 = vpop.f32.mrb[0].mxu0
    %v471 = vadd.f32 0.0, %v470
    %v472 = vpop.f32.mrb[0].mxu0
    %473 = vdwg.mxu0
    %v474 = vadd.f32 %v165, %v471
    %v475 = vxor.u32 %v474, 2147483648
    %v476 = vmul.f32 %v475, 1.442695
    %v477 = vpow.pop %v476
    %v478 = vadd.f32 %v477, 1.0
    %v479 = vrcp.pop %v478
    %v480 = vmul.f32 1.0, %v479
    %v481 = vtanh.pop %v474
    %v482 = vmul.f32 %v480, %v390
    %484 = vrot.lane.b32.xlu0 %v481, 64
    %v485 = vpop.permute.xlu0 %484
    %v487 = vmul.f32 %v480, %v485
    %489 = vrot.lane.b32.xlu0 %v487, 32
    %v490 = vpop.permute.xlu0 %489
    %v492 = vadd.f32 %v482, %v490
    %v493 = vtanh.pop %v492
    %495 = vrot.lane.b32.xlu0 %v493, 64
    %v496 = vpop.permute.xlu0 %495
    %v498 = vmul.f32 %v480, %v496
    %500 = vrot.lane.b32.xlu0 %v498, 32
    %v501 = vpop.permute.xlu0 %500
    %503 = vst.msk [vmem:[#allocation2 + $0x10] sm:$0xff] %vm63, %v501
    %v504 = vsel %vm63, %v501, 0
    %506 = vmatprep.subr.mxu0 0.0
    %507 = vmatpush1.msra.mxu0 %v193
    %508 = vmatprep.subr.mxu0 0.0
    %509 = vmatpush1.msra.mxu0 %v194
    %510 = vmatprep.subr.mxu0 0.0
    %511 = vmatpush1.msra.mxu0 %v195
    %512 = vmatprep.subr.mxu0 0.0
    %513 = vmatpush1.msra.mxu0 %v196
    %514 = vmatprep.subr.mxu0 0.0
    %515 = vmatpush1.msra.mxu0 0.0
    %516 = vmatprep.subr.mxu0 0.0
    %517 = vmatpush1.msra.mxu0 0.0
    %518 = vmatprep.subr.mxu0 0.0
    %519 = vmatpush1.msra.mxu0 0.0
    %520 = vmatprep.subr.mxu0 0.0
    %521 = vmatpush1.msra.mxu0 0.0
    %522 = vmatprep.subr.mxu0 0.0
    %523 = vmatpush1.msra.mxu0 0.0
    %524 = vmatprep.subr.mxu0 0.0
    %525 = vmatpush1.msra.mxu0 0.0
    %526 = vmatprep.subr.mxu0 0.0
    %527 = vmatpush1.msra.mxu0 0.0
    %528 = vmatprep.subr.mxu0 0.0
    %529 = vmatpush1.msra.mxu0 0.0
    %530 = vmatprep.subr.mxu0 0.0
    %531 = vmatpush1.msra.mxu0 0.0
    %532 = vmatprep.subr.mxu0 0.0
    %533 = vmatpush1.msra.mxu0 0.0
    %534 = vmatprep.subr.mxu0 0.0
    %535 = vmatpush1.msra.mxu0 0.0
    %536 = vmatprep.subr.mxu0 0.0
    %537 = vmatpush1.msra.mxu0 0.0
    %538 = vmatprep.subr.mxu0 0.0
    %539 = vmatpush1.msra.mxu0 0.0
    %540 = vmatprep.subr.mxu0 0.0
    %541 = vmatpush1.msra.mxu0 0.0
    %542 = vmatprep.subr.mxu0 0.0
    %543 = vmatpush1.msra.mxu0 0.0
    %544 = vmatprep.subr.mxu0 0.0
    %545 = vmatpush1.msra.mxu0 0.0
    %546 = vmatprep.subr.mxu0 0.0
    %547 = vmatpush1.msra.mxu0 0.0
    %548 = vmatprep.subr.mxu0 0.0
    %549 = vmatpush1.msra.mxu0 0.0
    %550 = vmatprep.subr.mxu0 0.0
    %551 = vmatpush1.msra.mxu0 0.0
    %552 = vmatprep.subr.mxu0 0.0
    %553 = vmatpush1.msra.mxu0 0.0
    %554 = vmatprep.subr.mxu0 0.0
    %555 = vmatpush1.msra.mxu0 0.0
    %556 = vmatprep.subr.mxu0 0.0
    %557 = vmatpush1.msra.mxu0 0.0
    %558 = vmatprep.subr.mxu0 0.0
    %559 = vmatpush1.msra.mxu0 0.0
    %560 = vmatprep.subr.mxu0 0.0
    %561 = vmatpush1.msra.mxu0 0.0
    %562 = vmatprep.subr.mxu0 0.0
    %563 = vmatpush1.msra.mxu0 0.0
    %564 = vmatprep.subr.mxu0 0.0
    %565 = vmatpush1.msra.mxu0 0.0
    %566 = vmatprep.subr.mxu0 0.0
    %567 = vmatpush1.msra.mxu0 0.0
    %568 = vmatprep.subr.mxu0 0.0
    %569 = vmatpush1.msra.mxu0 0.0
    %570 = vmatprep.mubr.f32.mxu0 0.0
    %571 = vmatmul.mubr.f32.gmra.mrb[0].mxu0 %v504
    %v572 = vpop.f32.mrb[0].mxu0
    %v573 = vadd.f32 0.0, %v572
    %v574 = vpop.f32.mrb[0].mxu0
    %575 = vdwg.mxu0
    %v576 = vadd.f32 %v170, %v573
    %v577 = vxor.u32 %v576, 2147483648
    %v578 = vmul.f32 %v577, 1.442695
    %v579 = vpow.pop %v578
    %v580 = vadd.f32 %v579, 1.0
    %v581 = vrcp.pop %v580
    %v582 = vmul.f32 1.0, %v581
    %v583 = vtanh.pop %v576
    %v584 = vmul.f32 %v582, %v492
    %586 = vrot.lane.b32.xlu0 %v583, 64
    %v587 = vpop.permute.xlu0 %586
    %v589 = vmul.f32 %v582, %v587
    %591 = vrot.lane.b32.xlu0 %v589, 32
    %v592 = vpop.permute.xlu0 %591
    %v594 = vadd.f32 %v584, %v592
    %v595 = vtanh.pop %v594
    %597 = vrot.lane.b32.xlu0 %v595, 64
    %v598 = vpop.permute.xlu0 %597
    %v600 = vmul.f32 %v582, %v598
    %602 = vrot.lane.b32.xlu0 %v600, 32
    %v603 = vpop.permute.xlu0 %602
    %605 = vst.msk [vmem:[#allocation2 + $0x18] sm:$0xff] %vm63, %v603
    %v606 = vsel %vm63, %v603, 0
    %608 = vmatprep.subr.mxu0 0.0
    %609 = vmatpush1.msra.mxu0 %v193
    %610 = vmatprep.subr.mxu0 0.0
    %611 = vmatpush1.msra.mxu0 %v194
    %612 = vmatprep.subr.mxu0 0.0
    %613 = vmatpush1.msra.mxu0 %v195
    %614 = vmatprep.subr.mxu0 0.0
    %615 = vmatpush1.msra.mxu0 %v196
    %616 = vmatprep.subr.mxu0 0.0
    %617 = vmatpush1.msra.mxu0 0.0
    %618 = vmatprep.subr.mxu0 0.0
    %619 = vmatpush1.msra.mxu0 0.0
    %620 = vmatprep.subr.mxu0 0.0
    %621 = vmatpush1.msra.mxu0 0.0
    %622 = vmatprep.subr.mxu0 0.0
    %623 = vmatpush1.msra.mxu0 0.0
    %624 = vmatprep.subr.mxu0 0.0
    %625 = vmatpush1.msra.mxu0 0.0
    %626 = vmatprep.subr.mxu0 0.0
    %627 = vmatpush1.msra.mxu0 0.0
    %628 = vmatprep.subr.mxu0 0.0
    %629 = vmatpush1.msra.mxu0 0.0
    %630 = vmatprep.subr.mxu0 0.0
    %631 = vmatpush1.msra.mxu0 0.0
    %632 = vmatprep.subr.mxu0 0.0
    %633 = vmatpush1.msra.mxu0 0.0
    %634 = vmatprep.subr.mxu0 0.0
    %635 = vmatpush1.msra.mxu0 0.0
    %636 = vmatprep.subr.mxu0 0.0
    %637 = vmatpush1.msra.mxu0 0.0
    %638 = vmatprep.subr.mxu0 0.0
    %639 = vmatpush1.msra.mxu0 0.0
    %640 = vmatprep.subr.mxu0 0.0
    %641 = vmatpush1.msra.mxu0 0.0
    %642 = vmatprep.subr.mxu0 0.0
    %643 = vmatpush1.msra.mxu0 0.0
    %644 = vmatprep.subr.mxu0 0.0
    %645 = vmatpush1.msra.mxu0 0.0
    %646 = vmatprep.subr.mxu0 0.0
    %647 = vmatpush1.msra.mxu0 0.0
    %648 = vmatprep.subr.mxu0 0.0
    %649 = vmatpush1.msra.mxu0 0.0
    %650 = vmatprep.subr.mxu0 0.0
    %651 = vmatpush1.msra.mxu0 0.0
    %652 = vmatprep.subr.mxu0 0.0
    %653 = vmatpush1.msra.mxu0 0.0
    %654 = vmatprep.subr.mxu0 0.0
    %655 = vmatpush1.msra.mxu0 0.0
    %656 = vmatprep.subr.mxu0 0.0
    %657 = vmatpush1.msra.mxu0 0.0
    %658 = vmatprep.subr.mxu0 0.0
    %659 = vmatpush1.msra.mxu0 0.0
    %660 = vmatprep.subr.mxu0 0.0
    %661 = vmatpush1.msra.mxu0 0.0
    %662 = vmatprep.subr.mxu0 0.0
    %663 = vmatpush1.msra.mxu0 0.0
    %664 = vmatprep.subr.mxu0 0.0
    %665 = vmatpush1.msra.mxu0 0.0
    %666 = vmatprep.subr.mxu0 0.0
    %667 = vmatpush1.msra.mxu0 0.0
    %668 = vmatprep.subr.mxu0 0.0
    %669 = vmatpush1.msra.mxu0 0.0
    %670 = vmatprep.subr.mxu0 0.0
    %671 = vmatpush1.msra.mxu0 0.0
    %672 = vmatprep.mubr.f32.mxu0 0.0
    %673 = vmatmul.mubr.f32.gmra.mrb[0].mxu0 %v606
    %v674 = vpop.f32.mrb[0].mxu0
    %v675 = vadd.f32 0.0, %v674
    %v676 = vpop.f32.mrb[0].mxu0
    %677 = vdwg.mxu0
    %v678 = vadd.f32 %v175, %v675
    %v679 = vxor.u32 %v678, 2147483648
    %v680 = vmul.f32 %v679, 1.442695
    %v681 = vpow.pop %v680
    %v682 = vadd.f32 %v681, 1.0
    %v683 = vrcp.pop %v682
    %v684 = vmul.f32 1.0, %v683
    %v685 = vtanh.pop %v678
    %v686 = vmul.f32 %v684, %v594
    %688 = vrot.lane.b32.xlu0 %v685, 64
    %v689 = vpop.permute.xlu0 %688
    %v691 = vmul.f32 %v684, %v689
    %693 = vrot.lane.b32.xlu0 %v691, 32
    %v694 = vpop.permute.xlu0 %693
    %v696 = vadd.f32 %v686, %v694
    %v697 = vtanh.pop %v696
    %699 = vrot.lane.b32.xlu0 %v697, 64
    %v700 = vpop.permute.xlu0 %699
    %v702 = vmul.f32 %v684, %v700
    %704 = vrot.lane.b32.xlu0 %v702, 32
    %v705 = vpop.permute.xlu0 %704
    %707 = vst.msk [vmem:[#allocation2 + $0x20] sm:$0xff] %vm63, %v705
    %v708 = vsel %vm63, %v705, 0
    %710 = vmatprep.subr.mxu0 0.0
    %711 = vmatpush1.msra.mxu0 %v193
    %712 = vmatprep.subr.mxu0 0.0
    %713 = vmatpush1.msra.mxu0 %v194
    %714 = vmatprep.subr.mxu0 0.0
    %715 = vmatpush1.msra.mxu0 %v195
    %716 = vmatprep.subr.mxu0 0.0
    %717 = vmatpush1.msra.mxu0 %v196
    %718 = vmatprep.subr.mxu0 0.0
    %719 = vmatpush1.msra.mxu0 0.0
    %720 = vmatprep.subr.mxu0 0.0
    %721 = vmatpush1.msra.mxu0 0.0
    %722 = vmatprep.subr.mxu0 0.0
    %723 = vmatpush1.msra.mxu0 0.0
    %724 = vmatprep.subr.mxu0 0.0
    %725 = vmatpush1.msra.mxu0 0.0
    %726 = vmatprep.subr.mxu0 0.0
    %727 = vmatpush1.msra.mxu0 0.0
    %728 = vmatprep.subr.mxu0 0.0
    %729 = vmatpush1.msra.mxu0 0.0
    %730 = vmatprep.subr.mxu0 0.0
    %731 = vmatpush1.msra.mxu0 0.0
    %732 = vmatprep.subr.mxu0 0.0
    %733 = vmatpush1.msra.mxu0 0.0
    %734 = vmatprep.subr.mxu0 0.0
    %735 = vmatpush1.msra.mxu0 0.0
    %736 = vmatprep.subr.mxu0 0.0
    %737 = vmatpush1.msra.mxu0 0.0
    %738 = vmatprep.subr.mxu0 0.0
    %739 = vmatpush1.msra.mxu0 0.0
    %740 = vmatprep.subr.mxu0 0.0
    %741 = vmatpush1.msra.mxu0 0.0
    %742 = vmatprep.subr.mxu0 0.0
    %743 = vmatpush1.msra.mxu0 0.0
    %744 = vmatprep.subr.mxu0 0.0
    %745 = vmatpush1.msra.mxu0 0.0
    %746 = vmatprep.subr.mxu0 0.0
    %747 = vmatpush1.msra.mxu0 0.0
    %748 = vmatprep.subr.mxu0 0.0
    %749 = vmatpush1.msra.mxu0 0.0
    %750 = vmatprep.subr.mxu0 0.0
    %751 = vmatpush1.msra.mxu0 0.0
    %752 = vmatprep.subr.mxu0 0.0
    %753 = vmatpush1.msra.mxu0 0.0
    %754 = vmatprep.subr.mxu0 0.0
    %755 = vmatpush1.msra.mxu0 0.0
    %756 = vmatprep.subr.mxu0 0.0
    %757 = vmatpush1.msra.mxu0 0.0
    %758 = vmatprep.subr.mxu0 0.0
    %759 = vmatpush1.msra.mxu0 0.0
    %760 = vmatprep.subr.mxu0 0.0
    %761 = vmatpush1.msra.mxu0 0.0
    %762 = vmatprep.subr.mxu0 0.0
    %763 = vmatpush1.msra.mxu0 0.0
    %764 = vmatprep.subr.mxu0 0.0
    %765 = vmatpush1.msra.mxu0 0.0
    %766 = vmatprep.subr.mxu0 0.0
    %767 = vmatpush1.msra.mxu0 0.0
    %768 = vmatprep.subr.mxu0 0.0
    %769 = vmatpush1.msra.mxu0 0.0
    %770 = vmatprep.subr.mxu0 0.0
    %771 = vmatpush1.msra.mxu0 0.0
    %772 = vmatprep.subr.mxu0 0.0
    %773 = vmatpush1.msra.mxu0 0.0
    %774 = vmatprep.mubr.f32.mxu0 0.0
    %775 = vmatmul.mubr.f32.gmra.mrb[0].mxu0 %v708
    %v776 = vpop.f32.mrb[0].mxu0
    %v777 = vadd.f32 0.0, %v776
    %v778 = vpop.f32.mrb[0].mxu0
    %779 = vdwg.mxu0
    %v780 = vadd.f32 %v180, %v777
    %v781 = vxor.u32 %v780, 2147483648
    %v782 = vmul.f32 %v781, 1.442695
    %v783 = vpow.pop %v782
    %v784 = vadd.f32 %v783, 1.0
    %v785 = vrcp.pop %v784
    %v786 = vmul.f32 1.0, %v785
    %v787 = vtanh.pop %v780
    %v788 = vmul.f32 %v786, %v696
    %790 = vrot.lane.b32.xlu0 %v787, 64
    %v791 = vpop.permute.xlu0 %790
    %v793 = vmul.f32 %v786, %v791
    %795 = vrot.lane.b32.xlu0 %v793, 32
    %v796 = vpop.permute.xlu0 %795
    %v798 = vadd.f32 %v788, %v796
    %v799 = vtanh.pop %v798
    %801 = vrot.lane.b32.xlu0 %v799, 64
    %v802 = vpop.permute.xlu0 %801
    %v804 = vmul.f32 %v786, %v802
    %806 = vrot.lane.b32.xlu0 %v804, 32
    %v807 = vpop.permute.xlu0 %806
    %809 = vst.msk [vmem:[#allocation2 + $0x28] sm:$0xff] %vm63, %v807
    %v810 = vsel %vm63, %v807, 0
    %812 = vmatprep.subr.mxu0 0.0
    %813 = vmatpush1.msra.mxu0 %v193
    %814 = vmatprep.subr.mxu0 0.0
    %815 = vmatpush1.msra.mxu0 %v194
    %816 = vmatprep.subr.mxu0 0.0
    %817 = vmatpush1.msra.mxu0 %v195
    %818 = vmatprep.subr.mxu0 0.0
    %819 = vmatpush1.msra.mxu0 %v196
    %820 = vmatprep.subr.mxu0 0.0
    %821 = vmatpush1.msra.mxu0 0.0
    %822 = vmatprep.subr.mxu0 0.0
    %823 = vmatpush1.msra.mxu0 0.0
    %824 = vmatprep.subr.mxu0 0.0
    %825 = vmatpush1.msra.mxu0 0.0
    %826 = vmatprep.subr.mxu0 0.0
    %827 = vmatpush1.msra.mxu0 0.0
    %828 = vmatprep.subr.mxu0 0.0
    %829 = vmatpush1.msra.mxu0 0.0
    %830 = vmatprep.subr.mxu0 0.0
    %831 = vmatpush1.msra.mxu0 0.0
    %832 = vmatprep.subr.mxu0 0.0
    %833 = vmatpush1.msra.mxu0 0.0
    %834 = vmatprep.subr.mxu0 0.0
    %835 = vmatpush1.msra.mxu0 0.0
    %836 = vmatprep.subr.mxu0 0.0
    %837 = vmatpush1.msra.mxu0 0.0
    %838 = vmatprep.subr.mxu0 0.0
    %839 = vmatpush1.msra.mxu0 0.0
    %840 = vmatprep.subr.mxu0 0.0
    %841 = vmatpush1.msra.mxu0 0.0
    %842 = vmatprep.subr.mxu0 0.0
    %843 = vmatpush1.msra.mxu0 0.0
    %844 = vmatprep.subr.mxu0 0.0
    %845 = vmatpush1.msra.mxu0 0.0
    %846 = vmatprep.subr.mxu0 0.0
    %847 = vmatpush1.msra.mxu0 0.0
    %848 = vmatprep.subr.mxu0 0.0
    %849 = vmatpush1.msra.mxu0 0.0
    %850 = vmatprep.subr.mxu0 0.0
    %851 = vmatpush1.msra.mxu0 0.0
    %852 = vmatprep.subr.mxu0 0.0
    %853 = vmatpush1.msra.mxu0 0.0
    %854 = vmatprep.subr.mxu0 0.0
    %855 = vmatpush1.msra.mxu0 0.0
    %856 = vmatprep.subr.mxu0 0.0
    %857 = vmatpush1.msra.mxu0 0.0
    %858 = vmatprep.subr.mxu0 0.0
    %859 = vmatpush1.msra.mxu0 0.0
    %860 = vmatprep.subr.mxu0 0.0
    %861 = vmatpush1.msra.mxu0 0.0
    %862 = vmatprep.subr.mxu0 0.0
    %863 = vmatpush1.msra.mxu0 0.0
    %864 = vmatprep.subr.mxu0 0.0
    %865 = vmatpush1.msra.mxu0 0.0
    %866 = vmatprep.subr.mxu0 0.0
    %867 = vmatpush1.msra.mxu0 0.0
    %868 = vmatprep.subr.mxu0 0.0
    %869 = vmatpush1.msra.mxu0 0.0
    %870 = vmatprep.subr.mxu0 0.0
    %871 = vmatpush1.msra.mxu0 0.0
    %872 = vmatprep.subr.mxu0 0.0
    %873 = vmatpush1.msra.mxu0 0.0
    %874 = vmatprep.subr.mxu0 0.0
    %875 = vmatpush1.msra.mxu0 0.0
    %876 = vmatprep.mubr.f32.mxu0 0.0
    %877 = vmatmul.mubr.f32.gmra.mrb[0].mxu0 %v810
    %v878 = vpop.f32.mrb[0].mxu0
    %v879 = vadd.f32 0.0, %v878
    %v880 = vpop.f32.mrb[0].mxu0
    %881 = vdwg.mxu0
    %v882 = vadd.f32 %v185, %v879
    %v883 = vxor.u32 %v882, 2147483648
    %v884 = vmul.f32 %v883, 1.442695
    %v885 = vpow.pop %v884
    %v886 = vadd.f32 %v885, 1.0
    %v887 = vrcp.pop %v886
    %v888 = vmul.f32 1.0, %v887
    %v889 = vtanh.pop %v882
    %v890 = vmul.f32 %v888, %v798
    %892 = vrot.lane.b32.xlu0 %v889, 64
    %v893 = vpop.permute.xlu0 %892
    %v895 = vmul.f32 %v888, %v893
    %897 = vrot.lane.b32.xlu0 %v895, 32
    %v898 = vpop.permute.xlu0 %897
    %v900 = vadd.f32 %v890, %v898
    %v901 = vtanh.pop %v900
    %903 = vrot.lane.b32.xlu0 %v901, 64
    %v904 = vpop.permute.xlu0 %903
    %v906 = vmul.f32 %v888, %v904
    %908 = vrot.lane.b32.xlu0 %v906, 32
    %v909 = vpop.permute.xlu0 %908
    %911 = vst.msk [vmem:[#allocation2 + $0x30] sm:$0xff] %vm63, %v909
    %v912 = vsel %vm63, %v909, 0
    %914 = vmatprep.subr.mxu0 0.0
    %915 = vmatpush1.msra.mxu0 %v193
    %916 = vmatprep.subr.mxu0 0.0
    %917 = vmatpush1.msra.mxu0 %v194
    %918 = vmatprep.subr.mxu0 0.0
    %919 = vmatpush1.msra.mxu0 %v195
    %920 = vmatprep.subr.mxu0 0.0
    %921 = vmatpush1.msra.mxu0 %v196
    %922 = vmatprep.subr.mxu0 0.0
    %923 = vmatpush1.msra.mxu0 0.0
    %924 = vmatprep.subr.mxu0 0.0
    %925 = vmatpush1.msra.mxu0 0.0
    %926 = vmatprep.subr.mxu0 0.0
    %927 = vmatpush1.msra.mxu0 0.0
    %928 = vmatprep.subr.mxu0 0.0
    %929 = vmatpush1.msra.mxu0 0.0
    %930 = vmatprep.subr.mxu0 0.0
    %931 = vmatpush1.msra.mxu0 0.0
    %932 = vmatprep.subr.mxu0 0.0
    %933 = vmatpush1.msra.mxu0 0.0
    %934 = vmatprep.subr.mxu0 0.0
    %935 = vmatpush1.msra.mxu0 0.0
    %936 = vmatprep.subr.mxu0 0.0
    %937 = vmatpush1.msra.mxu0 0.0
    %938 = vmatprep.subr.mxu0 0.0
    %939 = vmatpush1.msra.mxu0 0.0
    %940 = vmatprep.subr.mxu0 0.0
    %941 = vmatpush1.msra.mxu0 0.0
    %942 = vmatprep.subr.mxu0 0.0
    %943 = vmatpush1.msra.mxu0 0.0
    %944 = vmatprep.subr.mxu0 0.0
    %945 = vmatpush1.msra.mxu0 0.0
    %946 = vmatprep.subr.mxu0 0.0
    %947 = vmatpush1.msra.mxu0 0.0
    %948 = vmatprep.subr.mxu0 0.0
    %949 = vmatpush1.msra.mxu0 0.0
    %950 = vmatprep.subr.mxu0 0.0
    %951 = vmatpush1.msra.mxu0 0.0
    %952 = vmatprep.subr.mxu0 0.0
    %953 = vmatpush1.msra.mxu0 0.0
    %954 = vmatprep.subr.mxu0 0.0
    %955 = vmatpush1.msra.mxu0 0.0
    %956 = vmatprep.subr.mxu0 0.0
    %957 = vmatpush1.msra.mxu0 0.0
    %958 = vmatprep.subr.mxu0 0.0
    %959 = vmatpush1.msra.mxu0 0.0
    %960 = vmatprep.subr.mxu0 0.0
    %961 = vmatpush1.msra.mxu0 0.0
    %962 = vmatprep.subr.mxu0 0.0
    %963 = vmatpush1.msra.mxu0 0.0
    %964 = vmatprep.subr.mxu0 0.0
    %965 = vmatpush1.msra.mxu0 0.0
    %966 = vmatprep.subr.mxu0 0.0
    %967 = vmatpush1.msra.mxu0 0.0
    %968 = vmatprep.subr.mxu0 0.0
    %969 = vmatpush1.msra.mxu0 0.0
    %970 = vmatprep.subr.mxu0 0.0
    %971 = vmatpush1.msra.mxu0 0.0
    %972 = vmatprep.subr.mxu0 0.0
    %973 = vmatpush1.msra.mxu0 0.0
    %974 = vmatprep.subr.mxu0 0.0
    %975 = vmatpush1.msra.mxu0 0.0
    %976 = vmatprep.subr.mxu0 0.0
    %977 = vmatpush1.msra.mxu0 0.0
    %978 = vmatprep.mubr.f32.mxu0 0.0
    %979 = vmatmul.mubr.f32.gmra.mrb[0].mxu0 %v912
    %v980 = vpop.f32.mrb[0].mxu0
    %v981 = vadd.f32 0.0, %v980
    %v982 = vpop.f32.mrb[0].mxu0
    %983 = vdwg.mxu0
    %v984 = vadd.f32 %v190, %v981
    %v985 = vxor.u32 %v984, 2147483648
    %v986 = vmul.f32 %v985, 1.442695
    %v987 = vpow.pop %v986
    %v988 = vadd.f32 %v987, 1.0
    %v989 = vrcp.pop %v988
    %v990 = vmul.f32 1.0, %v989
    %v991 = vtanh.pop %v984
    %v992 = vmul.f32 %v990, %v900
    %994 = vrot.lane.b32.xlu0 %v991, 64
    %v995 = vpop.permute.xlu0 %994
    %v997 = vmul.f32 %v990, %v995
    %999 = vrot.lane.b32.xlu0 %v997, 32
    %v1000 = vpop.permute.xlu0 %999
    %v1002 = vadd.f32 %v992, %v1000
    %v1003 = vtanh.pop %v1002
    %1005 = vrot.lane.b32.xlu0 %v1003, 64
    %v1006 = vpop.permute.xlu0 %1005
    %v1008 = vmul.f32 %v990, %v1006
    %1010 = vrot.lane.b32.xlu0 %v1008, 32
    %v1011 = vpop.permute.xlu0 %1010
    %1013 = vst.msk [vmem:[#allocation2 + $0x38] sm:$0xff] %vm63, %v1011
    %v1014 = vld [vmem:[#allocation2] sm:$0xff]
    %v1015 = vld [vmem:[#allocation2 + $0x8] sm:$0xff]
    %v1016 = vld [vmem:[#allocation2 + $0x10] sm:$0xff]
    %v1017 = vld [vmem:[#allocation2 + $0x18] sm:$0xff]
    %v1018 = vld [vmem:[#allocation2 + $0x20] sm:$0xff]
    %v1019 = vld [vmem:[#allocation2 + $0x28] sm:$0xff]
    %v1020 = vld [vmem:[#allocation2 + $0x30] sm:$0xff]
    %v1021 = vld [vmem:[#allocation2 + $0x38] sm:$0xff]
    %v1022 = vld [vmem:[%s4] sm:$0xff]
    %v1023 = vld [vmem:[%s4 + $0x8] sm:$0xff]
    %v1024 = vld [vmem:[%s4 + $0x10] sm:$0xff]
    %v1025 = vld [vmem:[%s4 + $0x18] sm:$0xff]
    %v1026 = vld [vmem:[%s5] sm:$0x1]
    %v1028 = vlaneseq
    %v1029 = vshrl.u32 %v1028, 7
    %v1030 = vsub.s32 0, %v1029
    %v1031 = vrot.slane %v1026, %v1030
    %v1034 = vsel %vm63, %v1014, 0
    %v1037 = vsel %vm63, %v1015, 0
    %v1040 = vsel %vm63, %v1016, 0
    %v1043 = vsel %vm63, %v1017, 0
    %v1046 = vsel %vm63, %v1018, 0
    %v1049 = vsel %vm63, %v1019, 0
    %v1052 = vsel %vm63, %v1020, 0
    %v1055 = vsel %vm63, %v1021, 0
    %1057 = vmatprep.subr.mxu0 0.0
    %1058 = vmatpush1.msra.mxu0 %v1022
    %1059 = vmatprep.subr.mxu0 0.0
    %1060 = vmatpush1.msra.mxu0 %v1023
    %1061 = vmatprep.subr.mxu0 0.0
    %1062 = vmatpush1.msra.mxu0 %v1024
    %1063 = vmatprep.subr.mxu0 0.0
    %1064 = vmatpush1.msra.mxu0 %v1025
    %1065 = vmatprep.subr.mxu0 0.0
    %1066 = vmatpush1.msra.mxu0 0.0
    %1067 = vmatprep.subr.mxu0 0.0
    %1068 = vmatpush1.msra.mxu0 0.0
    %1069 = vmatprep.subr.mxu0 0.0
    %1070 = vmatpush1.msra.mxu0 0.0
    %1071 = vmatprep.subr.mxu0 0.0
    %1072 = vmatpush1.msra.mxu0 0.0
    %1073 = vmatprep.subr.mxu0 0.0
    %1074 = vmatpush1.msra.mxu0 0.0
    %1075 = vmatprep.subr.mxu0 0.0
    %1076 = vmatpush1.msra.mxu0 0.0
    %1077 = vmatprep.subr.mxu0 0.0
    %1078 = vmatpush1.msra.mxu0 0.0
    %1079 = vmatprep.subr.mxu0 0.0
    %1080 = vmatpush1.msra.mxu0 0.0
    %1081 = vmatprep.subr.mxu0 0.0
    %1082 = vmatpush1.msra.mxu0 0.0
    %1083 = vmatprep.subr.mxu0 0.0
    %1084 = vmatpush1.msra.mxu0 0.0
    %1085 = vmatprep.subr.mxu0 0.0
    %1086 = vmatpush1.msra.mxu0 0.0
    %1087 = vmatprep.subr.mxu0 0.0
    %1088 = vmatpush1.msra.mxu0 0.0
    %1089 = vmatprep.subr.mxu0 0.0
    %1090 = vmatpush1.msra.mxu0 0.0
    %1091 = vmatprep.subr.mxu0 0.0
    %1092 = vmatpush1.msra.mxu0 0.0
    %1093 = vmatprep.subr.mxu0 0.0
    %1094 = vmatpush1.msra.mxu0 0.0
    %1095 = vmatprep.subr.mxu0 0.0
    %1096 = vmatpush1.msra.mxu0 0.0
    %1097 = vmatprep.subr.mxu0 0.0
    %1098 = vmatpush1.msra.mxu0 0.0
    %1099 = vmatprep.subr.mxu0 0.0
    %1100 = vmatpush1.msra.mxu0 0.0
    %1101 = vmatprep.subr.mxu0 0.0
    %1102 = vmatpush1.msra.mxu0 0.0
    %1103 = vmatprep.subr.mxu0 0.0
    %1104 = vmatpush1.msra.mxu0 0.0
    %1105 = vmatprep.subr.mxu0 0.0
    %1106 = vmatpush1.msra.mxu0 0.0
    %1107 = vmatprep.subr.mxu0 0.0
    %1108 = vmatpush1.msra.mxu0 0.0
    %1109 = vmatprep.subr.mxu0 0.0
    %1110 = vmatpush1.msra.mxu0 0.0
    %1111 = vmatprep.subr.mxu0 0.0
    %1112 = vmatpush1.msra.mxu0 0.0
    %1113 = vmatprep.subr.mxu0 0.0
    %1114 = vmatpush1.msra.mxu0 0.0
    %1115 = vmatprep.subr.mxu0 0.0
    %1116 = vmatpush1.msra.mxu0 0.0
    %1117 = vmatprep.subr.mxu0 0.0
    %1118 = vmatpush1.msra.mxu0 0.0
    %1119 = vmatprep.subr.mxu0 0.0
    %1120 = vmatpush1.msra.mxu0 0.0
    %1121 = vmatprep.mubr.f32.mxu0 0.0
    %1122 = vmatmul.mubr.f32.gmra.mrb[0].mxu0 %v1034
    %v1123 = vpop.f32.mrb[0].mxu0
    %v1124 = vadd.f32 %v1031, %v1123
    %v1125 = vpop.f32.mrb[0].mxu0
    %1126 = vmatprep.mubr.f32.mxu0 0.0
    %1127 = vmatmul.mubr.f32.gmra.mrb[0].mxu0 %v1037
    %v1128 = vpop.f32.mrb[0].mxu0
    %v1129 = vadd.f32 %v1031, %v1128
    %v1130 = vpop.f32.mrb[0].mxu0
    %1131 = vmatprep.mubr.f32.mxu0 0.0
    %1132 = vmatmul.mubr.f32.gmra.mrb[0].mxu0 %v1040
    %v1133 = vpop.f32.mrb[0].mxu0
    %v1134 = vadd.f32 %v1031, %v1133
    %v1135 = vpop.f32.mrb[0].mxu0
    %1136 = vmatprep.mubr.f32.mxu0 0.0
    %1137 = vmatmul.mubr.f32.gmra.mrb[0].mxu0 %v1043
    %v1138 = vpop.f32.mrb[0].mxu0
    %v1139 = vadd.f32 %v1031, %v1138
    %v1140 = vpop.f32.mrb[0].mxu0
    %1141 = vmatprep.mubr.f32.mxu0 0.0
    %1142 = vmatmul.mubr.f32.gmra.mrb[0].mxu0 %v1046
    %v1143 = vpop.f32.mrb[0].mxu0
    %v1144 = vadd.f32 %v1031, %v1143
    %v1145 = vpop.f32.mrb[0].mxu0
    %1146 = vmatprep.mubr.f32.mxu0 0.0
    %1147 = vmatmul.mubr.f32.gmra.mrb[0].mxu0 %v1049
    %v1148 = vpop.f32.mrb[0].mxu0
    %v1149 = vadd.f32 %v1031, %v1148
    %v1150 = vpop.f32.mrb[0].mxu0
    %1151 = vmatprep.mubr.f32.mxu0 0.0
    %1152 = vmatmul.mubr.f32.gmra.mrb[0].mxu0 %v1052
    %v1153 = vpop.f32.mrb[0].mxu0
    %v1154 = vadd.f32 %v1031, %v1153
    %v1155 = vpop.f32.mrb[0].mxu0
    %1156 = vmatprep.mubr.f32.mxu0 0.0
    %1157 = vmatmul.mubr.f32.gmra.mrb[0].mxu0 %v1055
    %v1158 = vpop.f32.mrb[0].mxu0
    %v1159 = vadd.f32 %v1031, %v1158
    %v1160 = vpop.f32.mrb[0].mxu0
    %1161 = vdwg.mxu0
    %v1162 = vmax.f32 %v1124, 0.0
    %v1163 = vmax.f32 %v1129, 0.0
    %v1164 = vmax.f32 %v1134, 0.0
    %v1165 = vmax.f32 %v1139, 0.0
    %v1166 = vmax.f32 %v1144, 0.0
    %v1167 = vmax.f32 %v1149, 0.0
    %v1168 = vmax.f32 %v1154, 0.0
    %v1169 = vmax.f32 %v1159, 0.0
    %v1170 = vld [vmem:[#allocation3] sm:$0xff]
    %v1171 = vld [vmem:[#allocation3 + $0x8] sm:$0xff]
    %v1172 = vld [vmem:[#allocation3 + $0x10] sm:$0xff]
    %v1173 = vld [vmem:[#allocation3 + $0x18] sm:$0xff]
    %v1174 = vld [vmem:[%s7] sm:$0x1]
    %v1176 = vlaneseq
    %v1177 = vshrl.u32 %v1176, 7
    %v1178 = vsub.s32 0, %v1177
    %v1179 = vrot.slane %v1174, %v1178
    %v1182 = vsel %vm63, %v1162, 0
    %v1185 = vsel %vm63, %v1163, 0
    %v1188 = vsel %vm63, %v1164, 0
    %v1191 = vsel %vm63, %v1165, 0
    %v1194 = vsel %vm63, %v1166, 0
    %v1197 = vsel %vm63, %v1167, 0
    %v1200 = vsel %vm63, %v1168, 0
    %v1203 = vsel %vm63, %v1169, 0
    %1205 = vmatprep.subr.mxu0 0.0
    %1206 = vmatpush1.msra.mxu0 %v1170
    %1207 = vmatprep.subr.mxu0 0.0
    %1208 = vmatpush1.msra.mxu0 %v1171
    %1209 = vmatprep.subr.mxu0 0.0
    %1210 = vmatpush1.msra.mxu0 %v1172
    %1211 = vmatprep.subr.mxu0 0.0
    %1212 = vmatpush1.msra.mxu0 %v1173
    %1213 = vmatprep.subr.mxu0 0.0
    %1214 = vmatpush1.msra.mxu0 0.0
    %1215 = vmatprep.subr.mxu0 0.0
    %1216 = vmatpush1.msra.mxu0 0.0
    %1217 = vmatprep.subr.mxu0 0.0
    %1218 = vmatpush1.msra.mxu0 0.0
    %1219 = vmatprep.subr.mxu0 0.0
    %1220 = vmatpush1.msra.mxu0 0.0
    %1221 = vmatprep.subr.mxu0 0.0
    %1222 = vmatpush1.msra.mxu0 0.0
    %1223 = vmatprep.subr.mxu0 0.0
    %1224 = vmatpush1.msra.mxu0 0.0
    %1225 = vmatprep.subr.mxu0 0.0
    %1226 = vmatpush1.msra.mxu0 0.0
    %1227 = vmatprep.subr.mxu0 0.0
    %1228 = vmatpush1.msra.mxu0 0.0
    %1229 = vmatprep.subr.mxu0 0.0
    %1230 = vmatpush1.msra.mxu0 0.0
    %1231 = vmatprep.subr.mxu0 0.0
    %1232 = vmatpush1.msra.mxu0 0.0
    %1233 = vmatprep.subr.mxu0 0.0
    %1234 = vmatpush1.msra.mxu0 0.0
    %1235 = vmatprep.subr.mxu0 0.0
    %1236 = vmatpush1.msra.mxu0 0.0
    %1237 = vmatprep.subr.mxu0 0.0
    %1238 = vmatpush1.msra.mxu0 0.0
    %1239 = vmatprep.subr.mxu0 0.0
    %1240 = vmatpush1.msra.mxu0 0.0
    %1241 = vmatprep.subr.mxu0 0.0
    %1242 = vmatpush1.msra.mxu0 0.0
    %1243 = vmatprep.subr.mxu0 0.0
    %1244 = vmatpush1.msra.mxu0 0.0
    %1245 = vmatprep.subr.mxu0 0.0
    %1246 = vmatpush1.msra.mxu0 0.0
    %1247 = vmatprep.subr.mxu0 0.0
    %1248 = vmatpush1.msra.mxu0 0.0
    %1249 = vmatprep.subr.mxu0 0.0
    %1250 = vmatpush1.msra.mxu0 0.0
    %1251 = vmatprep.subr.mxu0 0.0
    %1252 = vmatpush1.msra.mxu0 0.0
    %1253 = vmatprep.subr.mxu0 0.0
    %1254 = vmatpush1.msra.mxu0 0.0
    %1255 = vmatprep.subr.mxu0 0.0
    %1256 = vmatpush1.msra.mxu0 0.0
    %1257 = vmatprep.subr.mxu0 0.0
    %1258 = vmatpush1.msra.mxu0 0.0
    %1259 = vmatprep.subr.mxu0 0.0
    %1260 = vmatpush1.msra.mxu0 0.0
    %1261 = vmatprep.subr.mxu0 0.0
    %1262 = vmatpush1.msra.mxu0 0.0
    %1263 = vmatprep.subr.mxu0 0.0
    %1264 = vmatpush1.msra.mxu0 0.0
    %1265 = vmatprep.subr.mxu0 0.0
    %1266 = vmatpush1.msra.mxu0 0.0
    %1267 = vmatprep.subr.mxu0 0.0
    %1268 = vmatpush1.msra.mxu0 0.0
    %1269 = vmatprep.mubr.f32.mxu0 0.0
    %1270 = vmatmul.mubr.f32.gmra.mrb[0].mxu0 %v1182
    %v1271 = vpop.f32.mrb[0].mxu0
    %v1272 = vadd.f32 %v1179, %v1271
    %v1273 = vpop.f32.mrb[0].mxu0
    %1274 = vmatprep.mubr.f32.mxu0 0.0
    %1275 = vmatmul.mubr.f32.gmra.mrb[0].mxu0 %v1185
    %v1276 = vpop.f32.mrb[0].mxu0
    %v1277 = vadd.f32 %v1179, %v1276
    %v1278 = vpop.f32.mrb[0].mxu0
    %1279 = vmatprep.mubr.f32.mxu0 0.0
    %1280 = vmatmul.mubr.f32.gmra.mrb[0].mxu0 %v1188
    %v1281 = vpop.f32.mrb[0].mxu0
    %v1282 = vadd.f32 %v1179, %v1281
    %v1283 = vpop.f32.mrb[0].mxu0
    %1284 = vmatprep.mubr.f32.mxu0 0.0
    %1285 = vmatmul.mubr.f32.gmra.mrb[0].mxu0 %v1191
    %v1286 = vpop.f32.mrb[0].mxu0
    %v1287 = vadd.f32 %v1179, %v1286
    %v1288 = vpop.f32.mrb[0].mxu0
    %1289 = vmatprep.mubr.f32.mxu0 0.0
    %1290 = vmatmul.mubr.f32.gmra.mrb[0].mxu0 %v1194
    %v1291 = vpop.f32.mrb[0].mxu0
    %v1292 = vadd.f32 %v1179, %v1291
    %v1293 = vpop.f32.mrb[0].mxu0
    %1294 = vmatprep.mubr.f32.mxu0 0.0
    %1295 = vmatmul.mubr.f32.gmra.mrb[0].mxu0 %v1197
    %v1296 = vpop.f32.mrb[0].mxu0
    %v1297 = vadd.f32 %v1179, %v1296
    %v1298 = vpop.f32.mrb[0].mxu0
    %1299 = vmatprep.mubr.f32.mxu0 0.0
    %1300 = vmatmul.mubr.f32.gmra.mrb[0].mxu0 %v1200
    %v1301 = vpop.f32.mrb[0].mxu0
    %v1302 = vadd.f32 %v1179, %v1301
    %v1303 = vpop.f32.mrb[0].mxu0
    %1304 = vmatprep.mubr.f32.mxu0 0.0
    %1305 = vmatmul.mubr.f32.gmra.mrb[0].mxu0 %v1203
    %v1306 = vpop.f32.mrb[0].mxu0
    %v1307 = vadd.f32 %v1179, %v1306
    %v1308 = vpop.f32.mrb[0].mxu0
    %1309 = vdwg.mxu0
    %v1310 = vxor.u32 %v1272, 2147483648
    %v1311 = vxor.u32 %v1277, 2147483648
    %v1312 = vxor.u32 %v1282, 2147483648
    %v1313 = vxor.u32 %v1287, 2147483648
    %v1314 = vxor.u32 %v1292, 2147483648
    %v1315 = vxor.u32 %v1297, 2147483648
    %v1316 = vxor.u32 %v1302, 2147483648
    %v1317 = vxor.u32 %v1307, 2147483648
    %v1318 = vmul.f32 %v1310, 1.442695
    %v1319 = vpow.pop %v1318
    %v1320 = vmul.f32 %v1311, 1.442695
    %v1321 = vpow.pop %v1320
    %v1322 = vmul.f32 %v1312, 1.442695
    %v1323 = vpow.pop %v1322
    %v1324 = vmul.f32 %v1313, 1.442695
    %v1325 = vpow.pop %v1324
    %v1326 = vmul.f32 %v1314, 1.442695
    %v1327 = vpow.pop %v1326
    %v1328 = vmul.f32 %v1315, 1.442695
    %v1329 = vpow.pop %v1328
    %v1330 = vmul.f32 %v1316, 1.442695
    %v1331 = vpow.pop %v1330
    %v1332 = vmul.f32 %v1317, 1.442695
    %v1333 = vpow.pop %v1332
    %v1334 = vadd.f32 %v1319, 1.0
    %v1335 = vadd.f32 %v1321, 1.0
    %v1336 = vadd.f32 %v1323, 1.0
    %v1337 = vadd.f32 %v1325, 1.0
    %v1338 = vadd.f32 %v1327, 1.0
    %v1339 = vadd.f32 %v1329, 1.0
    %v1340 = vadd.f32 %v1331, 1.0
    %v1341 = vadd.f32 %v1333, 1.0
    %v1342 = vrcp.pop %v1334
    %v1343 = vmul.f32 1.0, %v1342
    %v1344 = vrcp.pop %v1335
    %v1345 = vmul.f32 1.0, %v1344
    %v1346 = vrcp.pop %v1336
    %v1347 = vmul.f32 1.0, %v1346
    %v1348 = vrcp.pop %v1337
    %v1349 = vmul.f32 1.0, %v1348
    %v1350 = vrcp.pop %v1338
    %v1351 = vmul.f32 1.0, %v1350
    %v1352 = vrcp.pop %v1339
    %v1353 = vmul.f32 1.0, %v1352
    %v1354 = vrcp.pop %v1340
    %v1355 = vmul.f32 1.0, %v1354
    %v1356 = vrcp.pop %v1341
    %v1357 = vmul.f32 1.0, %v1356
    %1358 = vst [vmem:[#allocation6] sm:$0xff] %v1343
    %1359 = vst [vmem:[#allocation6 + $0x8] sm:$0xff] %v1345
    %1360 = vst [vmem:[#allocation6 + $0x10] sm:$0xff] %v1347
    %1361 = vst [vmem:[#allocation6 + $0x18] sm:$0xff] %v1349
    %1362 = vst [vmem:[#allocation6 + $0x20] sm:$0xff] %v1351
    %1363 = vst [vmem:[#allocation6 + $0x28] sm:$0xff] %v1353
    %1364 = vst [vmem:[#allocation6 + $0x30] sm:$0xff] %v1355
    %1365 = vst [vmem:[#allocation6 + $0x38] sm:$0xff] %v1357
    // Predicated region
    $region38: #{tpu_custom_call.1} parent=1 // pred_check
      _
    $region39: #{tpu_custom_call.1} parent=1 // pred_check_branch
      %1367 = sbr.rel (0) target = $region41
    $region40: #{tpu_custom_call.1} parent=1 // pred_region
      %s1369 = ssub.s32 1024, 1024
      %1370 = vsyncadd [#allocation5], %s1369
      %s1371 = sshll.u32 [#allocation6], 4
      %s1372 = int_to_ptr.vmem [resolvable:$true] %s1371
      %1377 = dma.vmem_to_hbm [thread:$0]  %s1372, 1024, %s8, [#allocation5], 128, 128, 8
    $region41: #{tpu_custom_call.1} parent=1 // pred_fallthru
      _
    // Predicated region
    $region42: #{tpu_custom_call.1} parent=1 // pred_check
      _
    $region43: #{tpu_custom_call.1} parent=1 // pred_check_branch
      %1379 = sbr.rel (0) target = $region45
    $region44: #{tpu_custom_call.1} parent=1 // pred_region
      %1380 = dma.done [#allocation5], 1024
    $region45: #{tpu_custom_call.1} parent=1 // pred_fallthru
      _
    %1381 = vsyncpa [#allocation4], 1
    %1382 = vsyncpa [#allocation5], 1

</llo_original>
